<compile_context>
chip_gen: v7x
topology: tpu7x:2x2x1
jax: 0.10.0
libtpu: 0.0.40
codegen_flags: <defaults>
</compile_context>

<pallas_src>
import functools

import jax
import jax.numpy as jnp
from jax.experimental import pallas as pl
from jax.experimental.pallas import tpu as pltpu


def _res_layer_kernel_resident(x_ref, w_ref, b_ref, o_ref, a_ref):
    """Resident-weight path; one (i, j) grid step.

    x_ref : (tm, D) f32   full-K x row block    (block (i, 0), j-invariant)
    w_ref : (D,  D) bf16  whole weight, resident (block (0, 0))
    b_ref : (1, tn) f32   bias tile              (block (0, j))
    o_ref : (tm,tn) f32   output tile            (block (i, j))
    a_ref : (tm, D) bf16  scratch: ReLU(x) cast once per row block
    """
    tn = o_ref.shape[-1]
    j = pl.program_id(1)

    @pl.when(j == 0)
    def _prologue():
        # ReLU in f32 (VPU), cast to bf16 once per row block for the MXU.
        a_ref[...] = jnp.maximum(x_ref[...], 0.0).astype(a_ref.dtype)

    col = pl.multiple_of(j * tn, tn)
    acc = jnp.dot(a_ref[...], w_ref[:, pl.ds(col, tn)],
                  preferred_element_type=jnp.float32)
    # Residual comes from the already-resident x row block (no second HBM read).
    o_ref[...] = (acc + b_ref[...] + x_ref[:, pl.ds(col, tn)]).astype(o_ref.dtype)


def _res_layer_kernel_tiled(x_ref, w_ref, b_ref, o_ref, acc_ref):
    """K-tiled fallback path; one (i, j, k) grid step.

    x_ref  : (tm, D) f32   full-K x row block   (block (i, 0), j/k-invariant)
    w_ref  : (tk,tn) bf16  weight tile          (block (k, j))
    b_ref  : (1, tn) f32   bias tile            (block (0, j))
    o_ref  : (tm,tn) f32   output tile          (block (i, j))
    acc_ref: (tm,tn) f32   VMEM accumulator scratch
    """
    tk, tn = w_ref.shape
    j = pl.program_id(1)
    k = pl.program_id(2)

    @pl.when(k == 0)
    def _init():
        # Seed the accumulator with bias + residual so finalize is just a store.
        col = pl.multiple_of(j * tn, tn)
        acc_ref[...] = b_ref[...] + x_ref[:, pl.ds(col, tn)]

    row = pl.multiple_of(k * tk, tk)
    a = jnp.maximum(x_ref[:, pl.ds(row, tk)], 0.0).astype(jnp.bfloat16)
    acc_ref[...] += jnp.dot(a, w_ref[...], preferred_element_type=jnp.float32)

    @pl.when(k == pl.num_programs(2) - 1)
    def _finalize():
        o_ref[...] = acc_ref[...].astype(o_ref.dtype)


def _pick_tile(dim, want, align):
    """Largest t <= want with dim % t == 0 and (t % align == 0 or t == dim)."""
    if dim <= want:
        return dim
    t = (want // align) * align
    while t >= align:
        if dim % t == 0:
            return t
        t -= align
    return dim  # full extent is always a legal block shape


def _vmem_limit(est_bytes):
    # Explicit scoped-VMEM budget with headroom; clamp to 48 MiB so the same
    # config stays within v7x's 64 MiB physical VMEM (v5e/v6e have 128 MiB).
    return int(min(48 * 1024 * 1024, max(16 * 1024 * 1024, 2 * est_bytes)))


@functools.partial(
    jax.jit, static_argnames=("tm", "tn", "tk", "force_tiled", "weight_vmem_bytes"))
def res_layer(x, w_t, bias, *, tm=512, tn=512, tk=512, force_tiled=False,
              weight_vmem_bytes=8 * 1024 * 1024):
    """y = ReLU(x) @ w_t + bias + x.

    x    : (B, D) float32
    w_t  : (D, D) bfloat16 -- PyTorch Linear weight (out, in) pre-transposed to
           (in, out) and cast ONCE at parameter-setup time (outside this call).
    bias : (D,) float32
    """
    B, D = x.shape
    assert w_t.shape == (D, D), "ResLayer requires a square Linear (D_in == D_out)"
    assert bias.shape == (D,)

    tm = _pick_tile(B, tm, 8)
    tn = _pick_tile(D, tn, 128)
    tk = _pick_tile(D, tk, 128)

    b2d = bias.reshape(1, D)

    use_resident = (not force_tiled) and (D * D * 2 <= weight_vmem_bytes)

    if use_resident:
        # Weight traffic is batch-independent here, so prefer >= 2 row blocks on
        # the parallel i axis: both v7x TensorCores get disjoint x row blocks.
        if B // tm < 2:
            half = _pick_tile(B, max(8, tm // 2), 8)
            if half < tm:
                tm = half
        grid = (B // tm, D // tn)
        vmem_est = (2 * tm * D * 4      # x row block (double-buffered, f32)
                    + 2 * D * D * 2     # resident bf16 weight
                    + 2 * tn * 4        # bias
                    + 2 * tm * tn * 4   # output tile
                    + tm * D * 2)       # bf16 activation scratch
        return pl.pallas_call(
            _res_layer_kernel_resident,
            out_shape=jax.ShapeDtypeStruct((B, D), x.dtype),
            grid_spec=pltpu.PrefetchScalarGridSpec(
                num_scalar_prefetch=0,
                grid=grid,
                in_specs=[
                    pl.BlockSpec((tm, D), lambda i, j: (i, 0)),  # x row block (j-invariant)
                    pl.BlockSpec((D, D), lambda i, j: (0, 0)),   # weight, fully resident
                    pl.BlockSpec((1, tn), lambda i, j: (0, j)),  # bias
                ],
                out_specs=pl.BlockSpec((tm, tn), lambda i, j: (i, j)),
                scratch_shapes=[pltpu.VMEM((tm, D), jnp.bfloat16)],
            ),
            compiler_params=pltpu.CompilerParams(
                # j must stay sequential ("arbitrary"): the bf16 activation
                # scratch is written at j == 0 and reused for later j.
                dimension_semantics=("parallel", "arbitrary"),
                vmem_limit_bytes=_vmem_limit(vmem_est),
            ),
        )(x, w_t, b2d)

    # K-tiled fallback (weight streamed) for large D.
    grid = (B // tm, D // tn, D // tk)
    vmem_est = (2 * tm * D * 4          # x row block (double-buffered, f32)
                + 2 * tk * tn * 2       # weight tile (double-buffered, bf16)
                + 2 * tn * 4            # bias
                + 2 * tm * tn * 4       # output tile
                + tm * tn * 4)          # f32 accumulator scratch
    return pl.pallas_call(
        _res_layer_kernel_tiled,
        out_shape=jax.ShapeDtypeStruct((B, D), x.dtype),
        grid_spec=pltpu.PrefetchScalarGridSpec(
            num_scalar_prefetch=0,
            grid=grid,
            in_specs=[
                pl.BlockSpec((tm, D), lambda i, j, k: (i, 0)),   # x row block (j/k-invariant)
                pl.BlockSpec((tk, tn), lambda i, j, k: (k, j)),  # weight tile (in, out)
                pl.BlockSpec((1, tn), lambda i, j, k: (0, j)),   # bias
            ],
            out_specs=pl.BlockSpec((tm, tn), lambda i, j, k: (i, j)),
            scratch_shapes=[pltpu.VMEM((tm, tn), jnp.float32)],
        ),
        compiler_params=pltpu.CompilerParams(
            dimension_semantics=("parallel", "parallel", "arbitrary"),
            vmem_limit_bytes=_vmem_limit(vmem_est),
        ),
    )(x, w_t, b2d)


if __name__ == "__main__":
    # Small but MXU-aligned shapes; exercises both the resident-weight path and
    # (forced) the K-tiled path with a (2, 2, 2) grid incl. init/finalize.
    B, D = 256, 512

    key = jax.random.PRNGKey(0)
    kx, kw, kb = jax.random.split(key, 3)

    # Deterministic PyTorch-style Linear init: U(-1/sqrt(D), 1/sqrt(D))
    bound = 1.0 / jnp.sqrt(jnp.float32(D))
    weight = jax.random.uniform(kw, (D, D), jnp.float32, -bound, bound)  # (out, in)
    bias = jax.random.uniform(kb, (D,), jnp.float32, -bound, bound)
    x = jax.random.normal(kx, (B, D), jnp.float32)

    # One-time parameter prep (NOT in the per-call path): transpose to (in, out)
    # and cast to bf16 for the MXU.
    w_t_bf16 = jnp.asarray(weight.T, dtype=jnp.bfloat16)

    # References: same bf16 operands / f32 accumulation, and pure-f32 PyTorch semantics.
    a = jnp.maximum(x, 0.0).astype(jnp.bfloat16)
    ref_bf16 = jnp.dot(a, w_t_bf16, preferred_element_type=jnp.float32) + bias + x
    ref_f32 = jnp.maximum(x, 0.0) @ weight.T + bias + x

    # Path 1: resident-weight kernel (D*D*2 = 0.5 MiB << VMEM budget).
    out_res = jax.block_until_ready(res_layer(x, w_t_bf16, bias))
    assert jnp.allclose(out_res, ref_bf16, atol=1e-4, rtol=1e-4), "resident: bf16 ref mismatch"
    assert jnp.allclose(out_res, ref_f32, atol=5e-2, rtol=5e-2), "resident: f32 ref mismatch"

    # Path 2: forced K-tiled streaming-weight kernel ((2, 2, 2) grid).
    out_tiled = jax.block_until_ready(
        res_layer(x, w_t_bf16, bias, tm=128, tn=256, tk=256, force_tiled=True))
    assert jnp.allclose(out_tiled, ref_bf16, atol=1e-4, rtol=1e-4), "tiled: bf16 ref mismatch"
    assert jnp.allclose(out_tiled, ref_f32, atol=5e-2, rtol=5e-2), "tiled: f32 ref mismatch"

    print("KERNEL_OK")
</pallas_src>

<mosaic_0001>
module attributes {stable_mosaic.version = 11 : i64} {
  func.func @_res_layer_kernel_resident(%arg0: i32, %arg1: i32, %arg2: memref<128x512xf32, #tpu.memory_space<vmem>>, %arg3: memref<512x512xbf16, #tpu.memory_space<vmem>>, %arg4: memref<1x512xf32, #tpu.memory_space<vmem>>, %arg5: memref<128x512xf32, #tpu.memory_space<vmem>>, %arg6: memref<128x512xbf16, #tpu.memory_space<vmem>>) attributes {dimension_semantics = [#tpu.dimension_semantics<parallel>, #tpu.dimension_semantics<arbitrary>], iteration_bounds = array<i64: 2, 1>, scalar_prefetch = 0 : i64, scratch_operands = 1 : i64, tpu.core_type = #tpu.core_type<tc>, window_params = [{transform_indices = @transform_0, window_bounds = array<i64: 128, 512>}, {pipeline_mode = #tpu.pipeline_mode<synchronous>, transform_indices = @transform_1, window_bounds = array<i64: 512, 512>}, {transform_indices = @transform_2, window_bounds = array<i64: 1, 512>}, {transform_indices = @transform_3, window_bounds = array<i64: 128, 512>}]} {
    %c0_i32 = arith.constant 0 : i32
    %0 = arith.cmpi eq, %arg1, %c0_i32 : i32
    %1 = arith.extui %0 : i1 to i32
    %c0_i32_0 = arith.constant 0 : i32
    %2 = arith.cmpi ne, %1, %c0_i32_0 : i32
    scf.if %2 {
      %c0_8 = arith.constant 0 : index
      %c0_9 = arith.constant 0 : index
      %16 = vector.load %arg2[%c0_8, %c0_9] : memref<128x512xf32, #tpu.memory_space<vmem>>, vector<128x512xf32>
      %cst_10 = arith.constant 0.000000e+00 : f32
      %17 = vector.broadcast %cst_10 : f32 to vector<128x512xf32>
      %18 = arith.maximumf %16, %17 : vector<128x512xf32>
      %19 = arith.truncf %18 : vector<128x512xf32> to vector<128x512xbf16>
      %c0_11 = arith.constant 0 : index
      %c0_12 = arith.constant 0 : index
      %20 = vector.load %arg6[%c0_11, %c0_12] : memref<128x512xbf16, #tpu.memory_space<vmem>>, vector<128x512xbf16>
      tpu.vector_store %arg6[%c0_11, %c0_12], %19 {strides = array<i32>} : memref<128x512xbf16, #tpu.memory_space<vmem>>, vector<128x512xbf16>,
    } else {
    }
    %c512_i32 = arith.constant 512 : i32
    %3 = arith.muli %arg1, %c512_i32 : i32
    %4 = tpu.assume_multiple %3, 512 : i32
    %c0 = arith.constant 0 : index
    %c0_1 = arith.constant 0 : index
    %5 = vector.load %arg6[%c0, %c0_1] : memref<128x512xbf16, #tpu.memory_space<vmem>>, vector<128x512xbf16>
    %c0_2 = arith.constant 0 : index
    %6 = arith.index_cast %4 : i32 to index
    %7 = vector.load %arg3[%c0_2, %6] : memref<512x512xbf16, #tpu.memory_space<vmem>>, vector<512x512xbf16>
    %cst = arith.constant dense<0.000000e+00> : vector<128x512xf32>
    %8 = tpu.matmul %5, %7, %cst {dimension_numbers = #tpu.dot_dimension_numbers<[1], [0], [0], [1], [0, 0, 1, 1], [], []>} : vector<128x512xbf16>, vector<512x512xbf16>, vector<128x512xf32> -> vector<128x512xf32>
    %c0_3 = arith.constant 0 : index
    %c0_4 = arith.constant 0 : index
    %9 = vector.load %arg4[%c0_3, %c0_4] : memref<1x512xf32, #tpu.memory_space<vmem>>, vector<1x512xf32>
    %10 = vector.broadcast %9 : vector<1x512xf32> to vector<128x512xf32>
    %11 = arith.addf %8, %10 : vector<128x512xf32>
    %c0_5 = arith.constant 0 : index
    %12 = arith.index_cast %4 : i32 to index
    %13 = vector.load %arg2[%c0_5, %12] : memref<128x512xf32, #tpu.memory_space<vmem>>, vector<128x512xf32>
    %14 = arith.addf %11, %13 : vector<128x512xf32>
    %c0_6 = arith.constant 0 : index
    %c0_7 = arith.constant 0 : index
    %15 = vector.load %arg5[%c0_6, %c0_7] : memref<128x512xf32, #tpu.memory_space<vmem>>, vector<128x512xf32>
    tpu.vector_store %arg5[%c0_6, %c0_7], %14 {strides = array<i32>} : memref<128x512xf32, #tpu.memory_space<vmem>>, vector<128x512xf32>,
    return
  }
  func.func @transform_0(%arg0: i32, %arg1: i32) -> (i32, i32) {
    %c0_i32 = arith.constant 0 : i32
    %c0_i32_0 = arith.constant 0 : i32
    return %arg0, %c0_i32 : i32, i32
  }
  func.func @transform_1(%arg0: i32, %arg1: i32) -> (i32, i32) {
    %c0_i32 = arith.constant 0 : i32
    %c0_i32_0 = arith.constant 0 : i32
    %c0_i32_1 = arith.constant 0 : i32
    return %c0_i32, %c0_i32_0 : i32, i32
  }
  func.func @transform_2(%arg0: i32, %arg1: i32) -> (i32, i32) {
    %c0_i32 = arith.constant 0 : i32
    %c0_i32_0 = arith.constant 0 : i32
    return %c0_i32, %arg1 : i32, i32
  }
  func.func @transform_3(%arg0: i32, %arg1: i32) -> (i32, i32) {
    %c0_i32 = arith.constant 0 : i32
    return %arg0, %arg1 : i32, i32
  }
}

</mosaic_0001>

<llo_original>
// kernel: res_layer.1
$region0: #{res_layer.1}
  #allocation0 [shape = 'u32[]', space=smem, size = 0x4, offset = 0x4, fixed_abs, tag = 'smem constant byte address 0x4 - core index']
  #allocation1 [shape = 'u32[144,128]{1,0:T(1,128)}', space=vmem, size = 0x12000, scoped, tag = 'internal scratch']
  #allocation2 [shape = 'bf16[128,512]{1,0:T(16,128)(2,1)}', space=vmem, size = 0x20000, scoped, tag = 'scratch operand']
  %s0 = inlined_call_operand.hbm [shape: f32[256,512], index: 0, kind: input, shape index: {}]
  %s1 = inlined_call_operand.hbm [shape: bf16[512,512], index: 1, kind: input, shape index: {}]
  %s2 = inlined_call_operand.vmem [shape: f32[1,512], index: 2, kind: input, shape index: {}]
  %s3 = inlined_call_operand.hbm [shape: f32[256,512], index: 3, kind: output, shape index: {}]
  %s4 = sld [smem:[#allocation0]]
  $region57: #{res_layer.1} parent=0
    _
  %s6 = ssub.s32 1, %s4
  %s7 = scalar_select 0, %s6, %s4
  $region1: #{res_layer.1} parent=0
    #allocation3 [shape = 'u8[524288]{0}', space=vmem, size = 0x80000, scoped, tag = 'input window, operand 0']
    #allocation4 [shape = 's32[2]{0}', space=sflag, size = 0x8, scoped, tag = 'scoped memory for res_layer.1']
    #allocation5 [shape = 's32[2]{0}', space=sflag, size = 0x8, scoped, tag = 'scoped memory for res_layer.1']
    #allocation6 [shape = 'u8[524288]{0}', space=vmem, size = 0x80000, scoped, tag = 'input window, operand 1, single buffered']
    #allocation7 [shape = 's32[1]{0}', space=sflag, size = 0x4, scoped, tag = 'scoped memory for res_layer.1']
    #allocation8 [shape = 'u8[524288]{0}', space=vmem, size = 0x80000, scoped, tag = 'output window, operand 0']
    %8 = vsyncpa [#allocation4], 0
    %s9 = scalar_lea.sflag [#allocation4], 1
    %10 = vsyncpa %s9, 0
    %11 = vsyncpa [#allocation7], 0
    %12 = vsyncpa [#allocation5], 0
    %s13 = scalar_lea.sflag [#allocation5], 1
    %14 = vsyncpa %s13, 0
    loop: start=0, step=1, limit=4
    $region2: #{res_layer.1} parent=1 // loop_pre_header
      _
    $region3: #{res_layer.1} parent=1 // loop_header
      %s16 = sphi 0, %s20
      %p17 = scmp.ge.s32.totalorder %s16, 4
      %s23 = sphi 0, %s35
      %s24 = sphi 0, %s31
      %s25 = sphi 0, %s23
      %s26 = sphi 0, %s24
      %s27 = sphi 0, %s25
      %s28 = sphi 0, %s26
      %s38 = sphi 0, %s40
      %s41 = sphi 0, %s38
      %s42 = sphi 0, %s41
      %s58 = sphi 0, %s42
      %s62 = sphi 0, %s62
      %s64 = sphi 0, %s62
      %s65 = sphi 0, %s64
      %s79 = sphi 0, %s65
      %s85 = sphi 0, %s87
      %s88 = sphi 0, %s85
      %s89 = sphi 0, %s88
      %s105 = sphi 0, %s89
      %s113 = sphi 0, %s115
      %s116 = sphi 0, %s113
      %s117 = sphi 0, %s116
      %s133 = sphi 0, %s117
    $region4: #{res_layer.1} parent=1 // loop_header_branch
      %19 = sbr.rel (%p17) target = $region8
    $region5: #{res_layer.1} parent=1 // loop_body
      %s21 = ssub.s32 %s16, 1
      %s22 = ssub.s32 %s16, 2
      %s29 = sadd.s32 1, %s24
      %p30 = scmp.ge.s32.totalorder %s29, 1
      %s31 = scalar_select %p30, 0, %s29
      %s32 = sadd.s32 1, %s23
      %s33 = scalar_select %p30, %s32, %s23
      %p34 = scmp.ge.s32.totalorder %s33, 2
      %s35 = scalar_select %p34, 0, %s33
      %s36 = ssub.s32 %s23, %s35
      %p37 = scmp.eq.s32.totalorder %s36, 0
      %s39 = sadd.s32 %s38, 1
      %s40 = scalar_select %p37, %s38, %s39
      %p43 = pneg %p37
      %p44 = scmp.eq.s32.totalorder %s16, 1
      %p45 = por %p43, %p44
      %p46 = scmp.ne.s32.totalorder %s38, %s41
      %p47 = scmp.eq.s32.totalorder %s16, 0
      %p48 = por %p46, %p47
      %p49 = scmp.ne.s32.totalorder %s38, %s41
      %p50 = scmp.eq.s32.totalorder %s21, 1
      %p51 = por %p49, %p50
      %p52 = scmp.ne.s32.totalorder %s41, %s42
      %p53 = scmp.eq.s32.totalorder %s21, 0
      %p54 = por %p52, %p53
      %p55 = scmp.ne.s32.totalorder %s41, %s42
      %p56 = scmp.eq.s32.totalorder %s22, 1
      %p57 = por %p55, %p56
      %p59 = scmp.ne.s32.totalorder %s42, %s58
      %p60 = scmp.eq.s32.totalorder %s22, 0
      %p61 = por %p59, %p60
      %s63 = sadd.s32 %s62, 1
      %p66 = scmp.eq.s32.totalorder %s16, 1
      %p67 = scmp.ne.s32.totalorder %s62, %s64
      %p68 = scmp.eq.s32.totalorder %s16, 0
      %p69 = por %p67, %p68
      %p70 = scmp.ne.s32.totalorder %s62, %s64
      %p71 = scmp.eq.s32.totalorder %s21, 1
      %p72 = por %p70, %p71
      %p73 = scmp.ne.s32.totalorder %s64, %s65
      %p74 = scmp.eq.s32.totalorder %s21, 0
      %p75 = por %p73, %p74
      %p76 = scmp.ne.s32.totalorder %s64, %s65
      %p77 = scmp.eq.s32.totalorder %s22, 1
      %p78 = por %p76, %p77
      %p80 = scmp.ne.s32.totalorder %s65, %s79
      %p81 = scmp.eq.s32.totalorder %s22, 0
      %p82 = por %p80, %p81
      %s83 = ssub.s32 %s24, %s31
      %p84 = scmp.eq.s32.totalorder %s83, 0
      %s86 = sadd.s32 %s85, 1
      %s87 = scalar_select %p84, %s85, %s86
      %p90 = pneg %p84
      %p91 = scmp.eq.s32.totalorder %s16, 1
      %p92 = por %p90, %p91
      %p93 = scmp.ne.s32.totalorder %s85, %s88
      %p94 = scmp.eq.s32.totalorder %s16, 0
      %p95 = por %p93, %p94
      %p96 = scmp.ne.s32.totalorder %s85, %s88
      %p97 = scmp.eq.s32.totalorder %s21, 1
      %p98 = por %p96, %p97
      %p99 = scmp.ne.s32.totalorder %s88, %s89
      %p100 = scmp.eq.s32.totalorder %s21, 0
      %p101 = por %p99, %p100
      %p102 = scmp.ne.s32.totalorder %s88, %s89
      %p103 = scmp.eq.s32.totalorder %s22, 1
      %p104 = por %p102, %p103
      %p106 = scmp.ne.s32.totalorder %s89, %s105
      %p107 = scmp.eq.s32.totalorder %s22, 0
      %p108 = por %p106, %p107
      %s109 = ssub.s32 %s23, %s35
      %s110 = ssub.s32 %s24, %s31
      %s111 = sor.u32 %s109, %s110
      %p112 = scmp.eq.s32.totalorder %s111, 0
      %s114 = sadd.s32 %s113, 1
      %s115 = scalar_select %p112, %s113, %s114
      %p118 = pneg %p112
      %p119 = scmp.eq.s32.totalorder %s16, 1
      %p120 = por %p118, %p119
      %p121 = scmp.ne.s32.totalorder %s113, %s116
      %p122 = scmp.eq.s32.totalorder %s16, 0
      %p123 = por %p121, %p122
      %p124 = scmp.ne.s32.totalorder %s113, %s116
      %p125 = scmp.eq.s32.totalorder %s21, 1
      %p126 = por %p124, %p125
      %p127 = scmp.ne.s32.totalorder %s116, %s117
      %p128 = scmp.eq.s32.totalorder %s21, 0
      %p129 = por %p127, %p128
      %p130 = scmp.ne.s32.totalorder %s116, %s117
      %p131 = scmp.eq.s32.totalorder %s22, 1
      %p132 = por %p130, %p131
      %p134 = scmp.ne.s32.totalorder %s117, %s133
      %p135 = scmp.eq.s32.totalorder %s22, 0
      %p136 = por %p134, %p135
      %p137 = scmp.le.s32.totalorder 1, %s16
      %p138 = scmp.lt.s32.totalorder %s16, 3
      %p139 = pnand %p137, %p138
      %p140 = pneg %p139
      // Predicated region
      $region9: #{res_layer.1} parent=5 // pred_check
        _
      $region10: #{res_layer.1} parent=5 // pred_check_branch
        %142 = sbr.rel (%p139) target = $region12
      $region11: #{res_layer.1} parent=5 // pred_region
        %s143 = ssub.s32 %s16, 1
        // Predicated region
        $region13: #{res_layer.1} parent=11 // pred_check
          %p144 = pneg %p75
        $region14: #{res_layer.1} parent=11 // pred_check_branch
          %146 = sbr.rel (%p144) target = $region16
        $region15: #{res_layer.1} parent=11 // pred_region
          %s148 = ssub.s32 16384, 16384
          %149 = vsyncadd [#allocation7], %s148
          %s150 = sshll.u32 [#allocation6], 4
          %s151 = int_to_ptr.vmem [resolvable:$true] %s150
          %156 = dma.hbm_to_vmem [thread:$0]  %s1, 16384, %s151, [#allocation7], 256, 256, 16
        $region16: #{res_layer.1} parent=11 // pred_fallthru
          _
        // Predicated region
        $region17: #{res_layer.1} parent=11 // pred_check
          %p157 = pneg %p101
        $region18: #{res_layer.1} parent=11 // pred_check_branch
          %159 = sbr.rel (%p157) target = $region20
        $region19: #{res_layer.1} parent=11 // pred_region
          %s160 = smul.u32 4, %s26
          %p161 = scmp.lt.s32.totalorder %s160, 3
          %s162 = scalar_select %p161, %s160, 3
          %s163 = scalar_lea.vmem %s2, %s162
          %s164 = smul.u32 4, %s26
        $region20: #{res_layer.1} parent=11 // pred_fallthru
          _
      $region12: #{res_layer.1} parent=5 // pred_fallthru
        _
      %p165 = scmp.lt.s32.totalorder %s16, 2
      // Predicated region
      $region21: #{res_layer.1} parent=5 // pred_check
        %p166 = pneg %p165
      $region22: #{res_layer.1} parent=5 // pred_check_branch
        %168 = sbr.rel (%p166) target = $region24
      $region23: #{res_layer.1} parent=5 // pred_region
        // Predicated region
        $region25: #{res_layer.1} parent=23 // pred_check
          %p169 = pneg %p48
        $region26: #{res_layer.1} parent=23 // pred_check_branch
          %171 = sbr.rel (%p169) target = $region28
        $region27: #{res_layer.1} parent=23 // pred_region
          %s172 = sand.u32 %s38, 1
          %s173 = scalar_lea.sflag [#allocation4], %s172
          %s174 = sand.u32 %s38, 1
          %s175 = smul.addr %s174, 512
          %s176 = scalar_lea.vmem [#allocation3], %s175
          %s177 = smul.u32 16, %s23
          %s179 = ssub.s32 8192, 8192
          %180 = vsyncadd %s173, %s179
          %s181 = smul.addr %s177, 4
          %s182 = smul.addr %s181, 128
          %s183 = scalar_lea.hbm %s0, %s182
          %s184 = sshll.u32 %s176, 4
          %s185 = int_to_ptr.vmem [resolvable:$true] %s184
          %190 = dma.hbm_to_vmem [thread:$0]  %s183, 8192, %s185, %s173, 512, 512, 32
        $region28: #{res_layer.1} parent=23 // pred_fallthru
          _
      $region24: #{res_layer.1} parent=5 // pred_fallthru
        _
      %p191 = scmp.le.s32.totalorder 1, %s16
      %p192 = scmp.lt.s32.totalorder %s16, 3
      %p193 = pnand %p191, %p192
      %p194 = pneg %p193
      // Predicated region
      $region29: #{res_layer.1} parent=5 // pred_check
        _
      $region30: #{res_layer.1} parent=5 // pred_check_branch
        %196 = sbr.rel (%p193) target = $region32
      $region31: #{res_layer.1} parent=5 // pred_region
        %s197 = ssub.s32 %s16, 1
        %s198 = sand.u32 %s41, 1
        %s199 = scalar_lea.sflag [#allocation4], %s198
        %s200 = sand.u32 %s41, 1
        %s201 = smul.addr %s200, 512
        %s202 = scalar_lea.vmem [#allocation3], %s201
        // Predicated region
        $region33: #{res_layer.1} parent=31 // pred_check
          %p203 = pneg %p54
        $region34: #{res_layer.1} parent=31 // pred_check_branch
          %205 = sbr.rel (%p203) target = $region36
        $region35: #{res_layer.1} parent=31 // pred_region
          %206 = dma.done %s199, 8192
        $region36: #{res_layer.1} parent=31 // pred_fallthru
          _
        // Predicated region
        $region37: #{res_layer.1} parent=31 // pred_check
          %p207 = pneg %p75
        $region38: #{res_layer.1} parent=31 // pred_check_branch
          %209 = sbr.rel (%p207) target = $region40
        $region39: #{res_layer.1} parent=31 // pred_region
          %210 = dma.done [#allocation7], 16384
        $region40: #{res_layer.1} parent=31 // pred_fallthru
          _
        %s211 = sand.u32 %s41, 1
        %s212 = scalar_lea.sflag [#allocation4], %s211
        %s213 = sand.u32 %s41, 1
        %s214 = smul.addr %s213, 512
        %s215 = scalar_lea.vmem [#allocation3], %s214
        %p216 = pneg %p54
        %p217 = pneg %p51
        %p218 = pneg %p75
        %p219 = pneg %p72
        %s220 = smul.u32 4, %s26
        %p221 = scmp.lt.s32.totalorder %s220, 3
        %s222 = scalar_select %p221, %s220, 3
        %s223 = scalar_lea.vmem %s2, %s222
        %p224 = pneg %p101
        %p225 = pneg %p98
        %p226 = pneg %p129
        %p227 = pneg %p126
        %s228 = sand.u32 %s116, 1
        %s229 = scalar_lea.sflag [#allocation5], %s228
        %s230 = sand.u32 %s116, 1
        %s231 = smul.addr %s230, 512
        %s232 = scalar_lea.vmem [#allocation8], %s231
        %s233 = smul.u32 16, %s25
        %s234 = smul.u32 4, %s26
        %p235 = scmp.lt.s32.totalorder %s234, 3
        %s236 = scalar_select %p235, %s234, 3
        %s237 = scalar_lea.vmem %s2, %s236
        %s238 = smul.u32 4, %s26
        %s239 = smul.u32 16, %s25
        %s240 = smul.u32 4, %s26
        %p241 = scmp.eq.s32.totalorder %s26, 0
        // Predicated region
        $region41: #{res_layer.1} parent=31 // pred_check
          %p242 = pneg %p241
        $region42: #{res_layer.1} parent=31 // pred_check_branch
          %244 = sbr.rel (%p242) target = $region44
        $region43: #{res_layer.1} parent=31 // pred_region
          %v245 = vld [vmem:[%s202] sm:$0xff]
          %v246 = vld [vmem:[%s202 + $0x8] sm:$0xff]
          %v247 = vld [vmem:[%s202 + $0x10] sm:$0xff]
          %v248 = vld [vmem:[%s202 + $0x18] sm:$0xff]
          %v249 = vld [vmem:[%s202 + $0x20] sm:$0xff]
          %v250 = vld [vmem:[%s202 + $0x28] sm:$0xff]
          %v251 = vld [vmem:[%s202 + $0x30] sm:$0xff]
          %v252 = vld [vmem:[%s202 + $0x38] sm:$0xff]
          %v253 = vld [vmem:[%s202 + $0x40] sm:$0xff]
          %v254 = vld [vmem:[%s202 + $0x48] sm:$0xff]
          %v255 = vld [vmem:[%s202 + $0x50] sm:$0xff]
          %v256 = vld [vmem:[%s202 + $0x58] sm:$0xff]
          %v257 = vld [vmem:[%s202 + $0x60] sm:$0xff]
          %v258 = vld [vmem:[%s202 + $0x68] sm:$0xff]
          %v259 = vld [vmem:[%s202 + $0x70] sm:$0xff]
          %v260 = vld [vmem:[%s202 + $0x78] sm:$0xff]
          %v261 = vld [vmem:[%s202 + $0x80] sm:$0xff]
          %v262 = vld [vmem:[%s202 + $0x88] sm:$0xff]
          %v263 = vld [vmem:[%s202 + $0x90] sm:$0xff]
          %v264 = vld [vmem:[%s202 + $0x98] sm:$0xff]
          %v265 = vld [vmem:[%s202 + $0xa0] sm:$0xff]
          %v266 = vld [vmem:[%s202 + $0xa8] sm:$0xff]
          %v267 = vld [vmem:[%s202 + $0xb0] sm:$0xff]
          %v268 = vld [vmem:[%s202 + $0xb8] sm:$0xff]
          %v269 = vld [vmem:[%s202 + $0xc0] sm:$0xff]
          %v270 = vld [vmem:[%s202 + $0xc8] sm:$0xff]
          %v271 = vld [vmem:[%s202 + $0xd0] sm:$0xff]
          %v272 = vld [vmem:[%s202 + $0xd8] sm:$0xff]
          %v273 = vld [vmem:[%s202 + $0xe0] sm:$0xff]
          %v274 = vld [vmem:[%s202 + $0xe8] sm:$0xff]
          %v275 = vld [vmem:[%s202 + $0xf0] sm:$0xff]
          %v276 = vld [vmem:[%s202 + $0xf8] sm:$0xff]
          %v277 = vld [vmem:[%s202 + $0x100] sm:$0xff]
          %v278 = vld [vmem:[%s202 + $0x108] sm:$0xff]
          %v279 = vld [vmem:[%s202 + $0x110] sm:$0xff]
          %v280 = vld [vmem:[%s202 + $0x118] sm:$0xff]
          %v281 = vld [vmem:[%s202 + $0x120] sm:$0xff]
          %v282 = vld [vmem:[%s202 + $0x128] sm:$0xff]
          %v283 = vld [vmem:[%s202 + $0x130] sm:$0xff]
          %v284 = vld [vmem:[%s202 + $0x138] sm:$0xff]
          %v285 = vld [vmem:[%s202 + $0x140] sm:$0xff]
          %v286 = vld [vmem:[%s202 + $0x148] sm:$0xff]
          %v287 = vld [vmem:[%s202 + $0x150] sm:$0xff]
          %v288 = vld [vmem:[%s202 + $0x158] sm:$0xff]
          %v289 = vld [vmem:[%s202 + $0x160] sm:$0xff]
          %v290 = vld [vmem:[%s202 + $0x168] sm:$0xff]
          %v291 = vld [vmem:[%s202 + $0x170] sm:$0xff]
          %v292 = vld [vmem:[%s202 + $0x178] sm:$0xff]
          %v293 = vld [vmem:[%s202 + $0x180] sm:$0xff]
          %v294 = vld [vmem:[%s202 + $0x188] sm:$0xff]
          %v295 = vld [vmem:[%s202 + $0x190] sm:$0xff]
          %v296 = vld [vmem:[%s202 + $0x198] sm:$0xff]
          %v297 = vld [vmem:[%s202 + $0x1a0] sm:$0xff]
          %v298 = vld [vmem:[%s202 + $0x1a8] sm:$0xff]
          %v299 = vld [vmem:[%s202 + $0x1b0] sm:$0xff]
          %v300 = vld [vmem:[%s202 + $0x1b8] sm:$0xff]
          %v301 = vld [vmem:[%s202 + $0x1c0] sm:$0xff]
          %v302 = vld [vmem:[%s202 + $0x1c8] sm:$0xff]
          %v303 = vld [vmem:[%s202 + $0x1d0] sm:$0xff]
          %v304 = vld [vmem:[%s202 + $0x1d8] sm:$0xff]
          %v305 = vld [vmem:[%s202 + $0x1e0] sm:$0xff]
          %v306 = vld [vmem:[%s202 + $0x1e8] sm:$0xff]
          %v307 = vld [vmem:[%s202 + $0x1f0] sm:$0xff]
          %v308 = vld [vmem:[%s202 + $0x1f8] sm:$0xff]
          %v309 = vmax.f32 %v245, 0.0
          %v310 = vmax.f32 %v246, 0.0
          %v311 = vmax.f32 %v247, 0.0
          %v312 = vmax.f32 %v248, 0.0
          %v313 = vmax.f32 %v249, 0.0
          %v314 = vmax.f32 %v250, 0.0
          %v315 = vmax.f32 %v251, 0.0
          %v316 = vmax.f32 %v252, 0.0
          %v317 = vmax.f32 %v253, 0.0
          %v318 = vmax.f32 %v254, 0.0
          %v319 = vmax.f32 %v255, 0.0
          %v320 = vmax.f32 %v256, 0.0
          %v321 = vmax.f32 %v257, 0.0
          %v322 = vmax.f32 %v258, 0.0
          %v323 = vmax.f32 %v259, 0.0
          %v324 = vmax.f32 %v260, 0.0
          %v325 = vmax.f32 %v261, 0.0
          %v326 = vmax.f32 %v262, 0.0
          %v327 = vmax.f32 %v263, 0.0
          %v328 = vmax.f32 %v264, 0.0
          %v329 = vmax.f32 %v265, 0.0
          %v330 = vmax.f32 %v266, 0.0
          %v331 = vmax.f32 %v267, 0.0
          %v332 = vmax.f32 %v268, 0.0
          %v333 = vmax.f32 %v269, 0.0
          %v334 = vmax.f32 %v270, 0.0
          %v335 = vmax.f32 %v271, 0.0
          %v336 = vmax.f32 %v272, 0.0
          %v337 = vmax.f32 %v273, 0.0
          %v338 = vmax.f32 %v274, 0.0
          %v339 = vmax.f32 %v275, 0.0
          %v340 = vmax.f32 %v276, 0.0
          %v341 = vmax.f32 %v277, 0.0
          %v342 = vmax.f32 %v278, 0.0
          %v343 = vmax.f32 %v279, 0.0
          %v344 = vmax.f32 %v280, 0.0
          %v345 = vmax.f32 %v281, 0.0
          %v346 = vmax.f32 %v282, 0.0
          %v347 = vmax.f32 %v283, 0.0
          %v348 = vmax.f32 %v284, 0.0
          %v349 = vmax.f32 %v285, 0.0
          %v350 = vmax.f32 %v286, 0.0
          %v351 = vmax.f32 %v287, 0.0
          %v352 = vmax.f32 %v288, 0.0
          %v353 = vmax.f32 %v289, 0.0
          %v354 = vmax.f32 %v290, 0.0
          %v355 = vmax.f32 %v291, 0.0
          %v356 = vmax.f32 %v292, 0.0
          %v357 = vmax.f32 %v293, 0.0
          %v358 = vmax.f32 %v294, 0.0
          %v359 = vmax.f32 %v295, 0.0
          %v360 = vmax.f32 %v296, 0.0
          %v361 = vmax.f32 %v297, 0.0
          %v362 = vmax.f32 %v298, 0.0
          %v363 = vmax.f32 %v299, 0.0
          %v364 = vmax.f32 %v300, 0.0
          %v365 = vmax.f32 %v301, 0.0
          %v366 = vmax.f32 %v302, 0.0
          %v367 = vmax.f32 %v303, 0.0
          %v368 = vmax.f32 %v304, 0.0
          %v369 = vmax.f32 %v305, 0.0
          %v370 = vmax.f32 %v306, 0.0
          %v371 = vmax.f32 %v307, 0.0
          %v372 = vmax.f32 %v308, 0.0
          %v373 = vpack.c.bf16 %v313, %v309
          %v374 = vpack.c.bf16 %v314, %v310
          %v375 = vpack.c.bf16 %v315, %v311
          %v376 = vpack.c.bf16 %v316, %v312
          %v377 = vpack.c.bf16 %v321, %v317
          %v378 = vpack.c.bf16 %v322, %v318
          %v379 = vpack.c.bf16 %v323, %v319
          %v380 = vpack.c.bf16 %v324, %v320
          %v381 = vpack.c.bf16 %v329, %v325
          %v382 = vpack.c.bf16 %v330, %v326
          %v383 = vpack.c.bf16 %v331, %v327
          %v384 = vpack.c.bf16 %v332, %v328
          %v385 = vpack.c.bf16 %v337, %v333
          %v386 = vpack.c.bf16 %v338, %v334
          %v387 = vpack.c.bf16 %v339, %v335
          %v388 = vpack.c.bf16 %v340, %v336
          %v389 = vpack.c.bf16 %v345, %v341
          %v390 = vpack.c.bf16 %v346, %v342
          %v391 = vpack.c.bf16 %v347, %v343
          %v392 = vpack.c.bf16 %v348, %v344
          %v393 = vpack.c.bf16 %v353, %v349
          %v394 = vpack.c.bf16 %v354, %v350
          %v395 = vpack.c.bf16 %v355, %v351
          %v396 = vpack.c.bf16 %v356, %v352
          %v397 = vpack.c.bf16 %v361, %v357
          %v398 = vpack.c.bf16 %v362, %v358
          %v399 = vpack.c.bf16 %v363, %v359
          %v400 = vpack.c.bf16 %v364, %v360
          %v401 = vpack.c.bf16 %v369, %v365
          %v402 = vpack.c.bf16 %v370, %v366
          %v403 = vpack.c.bf16 %v371, %v367
          %v404 = vpack.c.bf16 %v372, %v368
          %405 = vst [vmem:[#allocation2] sm:$0xff] %v373
          %406 = vst [vmem:[#allocation2 + $0x8] sm:$0xff] %v374
          %407 = vst [vmem:[#allocation2 + $0x10] sm:$0xff] %v375
          %408 = vst [vmem:[#allocation2 + $0x18] sm:$0xff] %v376
          %409 = vst [vmem:[#allocation2 + $0x20] sm:$0xff] %v377
          %410 = vst [vmem:[#allocation2 + $0x28] sm:$0xff] %v378
          %411 = vst [vmem:[#allocation2 + $0x30] sm:$0xff] %v379
          %412 = vst [vmem:[#allocation2 + $0x38] sm:$0xff] %v380
          %413 = vst [vmem:[#allocation2 + $0x40] sm:$0xff] %v381
          %414 = vst [vmem:[#allocation2 + $0x48] sm:$0xff] %v382
          %415 = vst [vmem:[#allocation2 + $0x50] sm:$0xff] %v383
          %416 = vst [vmem:[#allocation2 + $0x58] sm:$0xff] %v384
          %417 = vst [vmem:[#allocation2 + $0x60] sm:$0xff] %v385
          %418 = vst [vmem:[#allocation2 + $0x68] sm:$0xff] %v386
          %419 = vst [vmem:[#allocation2 + $0x70] sm:$0xff] %v387
          %420 = vst [vmem:[#allocation2 + $0x78] sm:$0xff] %v388
          %421 = vst [vmem:[#allocation2 + $0x80] sm:$0xff] %v389
          %422 = vst [vmem:[#allocation2 + $0x88] sm:$0xff] %v390
          %423 = vst [vmem:[#allocation2 + $0x90] sm:$0xff] %v391
          %424 = vst [vmem:[#allocation2 + $0x98] sm:$0xff] %v392
          %425 = vst [vmem:[#allocation2 + $0xa0] sm:$0xff] %v393
          %426 = vst [vmem:[#allocation2 + $0xa8] sm:$0xff] %v394
          %427 = vst [vmem:[#allocation2 + $0xb0] sm:$0xff] %v395
          %428 = vst [vmem:[#allocation2 + $0xb8] sm:$0xff] %v396
          %429 = vst [vmem:[#allocation2 + $0xc0] sm:$0xff] %v397
          %430 = vst [vmem:[#allocation2 + $0xc8] sm:$0xff] %v398
          %431 = vst [vmem:[#allocation2 + $0xd0] sm:$0xff] %v399
          %432 = vst [vmem:[#allocation2 + $0xd8] sm:$0xff] %v400
          %433 = vst [vmem:[#allocation2 + $0xe0] sm:$0xff] %v401
          %434 = vst [vmem:[#allocation2 + $0xe8] sm:$0xff] %v402
          %435 = vst [vmem:[#allocation2 + $0xf0] sm:$0xff] %v403
          %436 = vst [vmem:[#allocation2 + $0xf8] sm:$0xff] %v404
        $region44: #{res_layer.1} parent=31 // pred_fallthru
          _
        %s437 = smul.u32 %s26, 512
        %v438 = vld [vmem:[#allocation2] sm:$0xff]
        %v439 = vld [vmem:[#allocation2 + $0x8] sm:$0xff]
        %v440 = vld [vmem:[#allocation2 + $0x10] sm:$0xff]
        %v441 = vld [vmem:[#allocation2 + $0x18] sm:$0xff]
        %v442 = vld [vmem:[#allocation2 + $0x20] sm:$0xff]
        %v443 = vld [vmem:[#allocation2 + $0x28] sm:$0xff]
        %v444 = vld [vmem:[#allocation2 + $0x30] sm:$0xff]
        %v445 = vld [vmem:[#allocation2 + $0x38] sm:$0xff]
        %v446 = vld [vmem:[#allocation2 + $0x40] sm:$0xff]
        %v447 = vld [vmem:[#allocation2 + $0x48] sm:$0xff]
        %v448 = vld [vmem:[#allocation2 + $0x50] sm:$0xff]
        %v449 = vld [vmem:[#allocation2 + $0x58] sm:$0xff]
        %v450 = vld [vmem:[#allocation2 + $0x60] sm:$0xff]
        %v451 = vld [vmem:[#allocation2 + $0x68] sm:$0xff]
        %v452 = vld [vmem:[#allocation2 + $0x70] sm:$0xff]
        %v453 = vld [vmem:[#allocation2 + $0x78] sm:$0xff]
        %v454 = vld [vmem:[#allocation2 + $0x80] sm:$0xff]
        %v455 = vld [vmem:[#allocation2 + $0x88] sm:$0xff]
        %v456 = vld [vmem:[#allocation2 + $0x90] sm:$0xff]
        %v457 = vld [vmem:[#allocation2 + $0x98] sm:$0xff]
        %v458 = vld [vmem:[#allocation2 + $0xa0] sm:$0xff]
        %v459 = vld [vmem:[#allocation2 + $0xa8] sm:$0xff]
        %v460 = vld [vmem:[#allocation2 + $0xb0] sm:$0xff]
        %v461 = vld [vmem:[#allocation2 + $0xb8] sm:$0xff]
        %v462 = vld [vmem:[#allocation2 + $0xc0] sm:$0xff]
        %v463 = vld [vmem:[#allocation2 + $0xc8] sm:$0xff]
        %v464 = vld [vmem:[#allocation2 + $0xd0] sm:$0xff]
        %v465 = vld [vmem:[#allocation2 + $0xd8] sm:$0xff]
        %v466 = vld [vmem:[#allocation2 + $0xe0] sm:$0xff]
        %v467 = vld [vmem:[#allocation2 + $0xe8] sm:$0xff]
        %v468 = vld [vmem:[#allocation2 + $0xf0] sm:$0xff]
        %v469 = vld [vmem:[#allocation2 + $0xf8] sm:$0xff]
        %s470 = sshra.s32 %s437, 7
        %s471 = sand.u32 %s437, 127
        %s472 = smul.addr %s470, 4
        %s473 = scalar_lea.vmem [#allocation6], %s472
        %v474 = vld [vmem:[%s473] sm:$0xff]
        %v475 = vld [vmem:[%s473 + $0x8] sm:$0xff]
        %v476 = vld [vmem:[%s473 + $0x10] sm:$0xff]
        %v477 = vld [vmem:[%s473 + $0x18] sm:$0xff]
        %v478 = vld [vmem:[%s473 + $0x20] sm:$0xff]
        %v479 = vld [vmem:[%s473 + $0x28] sm:$0xff]
        %v480 = vld [vmem:[%s473 + $0x30] sm:$0xff]
        %v481 = vld [vmem:[%s473 + $0x38] sm:$0xff]
        %v482 = vld [vmem:[%s473 + $0x40] sm:$0xff]
        %v483 = vld [vmem:[%s473 + $0x48] sm:$0xff]
        %v484 = vld [vmem:[%s473 + $0x50] sm:$0xff]
        %v485 = vld [vmem:[%s473 + $0x58] sm:$0xff]
        %v486 = vld [vmem:[%s473 + $0x60] sm:$0xff]
        %v487 = vld [vmem:[%s473 + $0x68] sm:$0xff]
        %v488 = vld [vmem:[%s473 + $0x70] sm:$0xff]
        %v489 = vld [vmem:[%s473 + $0x78] sm:$0xff]
        %v490 = vld [vmem:[%s473 + $0x80] sm:$0xff]
        %v491 = vld [vmem:[%s473 + $0x88] sm:$0xff]
        %v492 = vld [vmem:[%s473 + $0x90] sm:$0xff]
        %v493 = vld [vmem:[%s473 + $0x98] sm:$0xff]
        %v494 = vld [vmem:[%s473 + $0xa0] sm:$0xff]
        %v495 = vld [vmem:[%s473 + $0xa8] sm:$0xff]
        %v496 = vld [vmem:[%s473 + $0xb0] sm:$0xff]
        %v497 = vld [vmem:[%s473 + $0xb8] sm:$0xff]
        %v498 = vld [vmem:[%s473 + $0xc0] sm:$0xff]
        %v499 = vld [vmem:[%s473 + $0xc8] sm:$0xff]
        %v500 = vld [vmem:[%s473 + $0xd0] sm:$0xff]
        %v501 = vld [vmem:[%s473 + $0xd8] sm:$0xff]
        %v502 = vld [vmem:[%s473 + $0xe0] sm:$0xff]
        %v503 = vld [vmem:[%s473 + $0xe8] sm:$0xff]
        %v504 = vld [vmem:[%s473 + $0xf0] sm:$0xff]
        %v505 = vld [vmem:[%s473 + $0xf8] sm:$0xff]
        %v506 = vld [vmem:[%s473 + $0x100] sm:$0xff]
        %v507 = vld [vmem:[%s473 + $0x108] sm:$0xff]
        %v508 = vld [vmem:[%s473 + $0x110] sm:$0xff]
        %v509 = vld [vmem:[%s473 + $0x118] sm:$0xff]
        %v510 = vld [vmem:[%s473 + $0x120] sm:$0xff]
        %v511 = vld [vmem:[%s473 + $0x128] sm:$0xff]
        %v512 = vld [vmem:[%s473 + $0x130] sm:$0xff]
        %v513 = vld [vmem:[%s473 + $0x138] sm:$0xff]
        %v514 = vld [vmem:[%s473 + $0x140] sm:$0xff]
        %v515 = vld [vmem:[%s473 + $0x148] sm:$0xff]
        %v516 = vld [vmem:[%s473 + $0x150] sm:$0xff]
        %v517 = vld [vmem:[%s473 + $0x158] sm:$0xff]
        %v518 = vld [vmem:[%s473 + $0x160] sm:$0xff]
        %v519 = vld [vmem:[%s473 + $0x168] sm:$0xff]
        %v520 = vld [vmem:[%s473 + $0x170] sm:$0xff]
        %v521 = vld [vmem:[%s473 + $0x178] sm:$0xff]
        %v522 = vld [vmem:[%s473 + $0x180] sm:$0xff]
        %v523 = vld [vmem:[%s473 + $0x188] sm:$0xff]
        %v524 = vld [vmem:[%s473 + $0x190] sm:$0xff]
        %v525 = vld [vmem:[%s473 + $0x198] sm:$0xff]
        %v526 = vld [vmem:[%s473 + $0x1a0] sm:$0xff]
        %v527 = vld [vmem:[%s473 + $0x1a8] sm:$0xff]
        %v528 = vld [vmem:[%s473 + $0x1b0] sm:$0xff]
        %v529 = vld [vmem:[%s473 + $0x1b8] sm:$0xff]
        %v530 = vld [vmem:[%s473 + $0x1c0] sm:$0xff]
        %v531 = vld [vmem:[%s473 + $0x1c8] sm:$0xff]
        %v532 = vld [vmem:[%s473 + $0x1d0] sm:$0xff]
        %v533 = vld [vmem:[%s473 + $0x1d8] sm:$0xff]
        %v534 = vld [vmem:[%s473 + $0x1e0] sm:$0xff]
        %v535 = vld [vmem:[%s473 + $0x1e8] sm:$0xff]
        %v536 = vld [vmem:[%s473 + $0x1f0] sm:$0xff]
        %v537 = vld [vmem:[%s473 + $0x1f8] sm:$0xff]
        %v538 = vld [vmem:[%s473 + $0x200] sm:$0xff]
        %v539 = vld [vmem:[%s473 + $0x208] sm:$0xff]
        %v540 = vld [vmem:[%s473 + $0x210] sm:$0xff]
        %v541 = vld [vmem:[%s473 + $0x218] sm:$0xff]
        %v542 = vld [vmem:[%s473 + $0x220] sm:$0xff]
        %v543 = vld [vmem:[%s473 + $0x228] sm:$0xff]
        %v544 = vld [vmem:[%s473 + $0x230] sm:$0xff]
        %v545 = vld [vmem:[%s473 + $0x238] sm:$0xff]
        %v546 = vld [vmem:[%s473 + $0x240] sm:$0xff]
        %v547 = vld [vmem:[%s473 + $0x248] sm:$0xff]
        %v548 = vld [vmem:[%s473 + $0x250] sm:$0xff]
        %v549 = vld [vmem:[%s473 + $0x258] sm:$0xff]
        %v550 = vld [vmem:[%s473 + $0x260] sm:$0xff]
        %v551 = vld [vmem:[%s473 + $0x268] sm:$0xff]
        %v552 = vld [vmem:[%s473 + $0x270] sm:$0xff]
        %v553 = vld [vmem:[%s473 + $0x278] sm:$0xff]
        %v554 = vld [vmem:[%s473 + $0x280] sm:$0xff]
        %v555 = vld [vmem:[%s473 + $0x288] sm:$0xff]
        %v556 = vld [vmem:[%s473 + $0x290] sm:$0xff]
        %v557 = vld [vmem:[%s473 + $0x298] sm:$0xff]
        %v558 = vld [vmem:[%s473 + $0x2a0] sm:$0xff]
        %v559 = vld [vmem:[%s473 + $0x2a8] sm:$0xff]
        %v560 = vld [vmem:[%s473 + $0x2b0] sm:$0xff]
        %v561 = vld [vmem:[%s473 + $0x2b8] sm:$0xff]
        %v562 = vld [vmem:[%s473 + $0x2c0] sm:$0xff]
        %v563 = vld [vmem:[%s473 + $0x2c8] sm:$0xff]
        %v564 = vld [vmem:[%s473 + $0x2d0] sm:$0xff]
        %v565 = vld [vmem:[%s473 + $0x2d8] sm:$0xff]
        %v566 = vld [vmem:[%s473 + $0x2e0] sm:$0xff]
        %v567 = vld [vmem:[%s473 + $0x2e8] sm:$0xff]
        %v568 = vld [vmem:[%s473 + $0x2f0] sm:$0xff]
        %v569 = vld [vmem:[%s473 + $0x2f8] sm:$0xff]
        %v570 = vld [vmem:[%s473 + $0x300] sm:$0xff]
        %v571 = vld [vmem:[%s473 + $0x308] sm:$0xff]
        %v572 = vld [vmem:[%s473 + $0x310] sm:$0xff]
        %v573 = vld [vmem:[%s473 + $0x318] sm:$0xff]
        %v574 = vld [vmem:[%s473 + $0x320] sm:$0xff]
        %v575 = vld [vmem:[%s473 + $0x328] sm:$0xff]
        %v576 = vld [vmem:[%s473 + $0x330] sm:$0xff]
        %v577 = vld [vmem:[%s473 + $0x338] sm:$0xff]
        %v578 = vld [vmem:[%s473 + $0x340] sm:$0xff]
        %v579 = vld [vmem:[%s473 + $0x348] sm:$0xff]
        %v580 = vld [vmem:[%s473 + $0x350] sm:$0xff]
        %v581 = vld [vmem:[%s473 + $0x358] sm:$0xff]
        %v582 = vld [vmem:[%s473 + $0x360] sm:$0xff]
        %v583 = vld [vmem:[%s473 + $0x368] sm:$0xff]
        %v584 = vld [vmem:[%s473 + $0x370] sm:$0xff]
        %v585 = vld [vmem:[%s473 + $0x378] sm:$0xff]
        %v586 = vld [vmem:[%s473 + $0x380] sm:$0xff]
        %v587 = vld [vmem:[%s473 + $0x388] sm:$0xff]
        %v588 = vld [vmem:[%s473 + $0x390] sm:$0xff]
        %v589 = vld [vmem:[%s473 + $0x398] sm:$0xff]
        %v590 = vld [vmem:[%s473 + $0x3a0] sm:$0xff]
        %v591 = vld [vmem:[%s473 + $0x3a8] sm:$0xff]
        %v592 = vld [vmem:[%s473 + $0x3b0] sm:$0xff]
        %v593 = vld [vmem:[%s473 + $0x3b8] sm:$0xff]
        %v594 = vld [vmem:[%s473 + $0x3c0] sm:$0xff]
        %v595 = vld [vmem:[%s473 + $0x3c8] sm:$0xff]
        %v596 = vld [vmem:[%s473 + $0x3d0] sm:$0xff]
        %v597 = vld [vmem:[%s473 + $0x3d8] sm:$0xff]
        %v598 = vld [vmem:[%s473 + $0x3e0] sm:$0xff]
        %v599 = vld [vmem:[%s473 + $0x3e8] sm:$0xff]
        %v600 = vld [vmem:[%s473 + $0x3f0] sm:$0xff]
        %v601 = vld [vmem:[%s473 + $0x3f8] sm:$0xff]
        %v602 = vld [vmem:[%s237] sm:$0xf]
        %v604 = vlaneseq
        %v605 = vshrl.u32 %v604, 7
        %v606 = vsub.s32 0, %v605
        %v607 = vrot.slane %v602, %v606
        %v608 = vlaneseq
        %v609 = vshrl.u32 %v608, 7
        %v610 = vsub.s32 1, %v609
        %v611 = vrot.slane %v602, %v610
        %v612 = vlaneseq
        %v613 = vshrl.u32 %v612, 7
        %v614 = vsub.s32 2, %v613
        %v615 = vrot.slane %v602, %v614
        %v616 = vlaneseq
        %v617 = vshrl.u32 %v616, 7
        %v618 = vsub.s32 3, %v617
        %v619 = vrot.slane %v602, %v618
        %v752 = vunpack.c.l.b16 %v474
        %v753 = vunpack.c.h.b16 %v474
        %v754 = vunpack.c.l.b16 %v475
        %v755 = vunpack.c.h.b16 %v475
        %v756 = vunpack.c.l.b16 %v476
        %v757 = vunpack.c.h.b16 %v476
        %v758 = vunpack.c.l.b16 %v477
        %v759 = vunpack.c.h.b16 %v477
        %v760 = vunpack.c.l.b16 %v478
        %v761 = vunpack.c.h.b16 %v478
        %v762 = vunpack.c.l.b16 %v479
        %v763 = vunpack.c.h.b16 %v479
        %v764 = vunpack.c.l.b16 %v480
        %v765 = vunpack.c.h.b16 %v480
        %v766 = vunpack.c.l.b16 %v481
        %v767 = vunpack.c.h.b16 %v481
        %v768 = vunpack.c.l.b16 %v482
        %v769 = vunpack.c.h.b16 %v482
        %v770 = vunpack.c.l.b16 %v483
        %v771 = vunpack.c.h.b16 %v483
        %v772 = vunpack.c.l.b16 %v484
        %v773 = vunpack.c.h.b16 %v484
        %v774 = vunpack.c.l.b16 %v485
        %v775 = vunpack.c.h.b16 %v485
        %v776 = vunpack.c.l.b16 %v486
        %v777 = vunpack.c.h.b16 %v486
        %v778 = vunpack.c.l.b16 %v487
        %v779 = vunpack.c.h.b16 %v487
        %v780 = vunpack.c.l.b16 %v488
        %v781 = vunpack.c.h.b16 %v488
        %v782 = vunpack.c.l.b16 %v489
        %v783 = vunpack.c.h.b16 %v489
        %v784 = vunpack.c.l.b16 %v490
        %v785 = vunpack.c.h.b16 %v490
        %v786 = vunpack.c.l.b16 %v491
        %v787 = vunpack.c.h.b16 %v491
        %v788 = vunpack.c.l.b16 %v492
        %v789 = vunpack.c.h.b16 %v492
        %v790 = vunpack.c.l.b16 %v493
        %v791 = vunpack.c.h.b16 %v493
        %v792 = vunpack.c.l.b16 %v494
        %v793 = vunpack.c.h.b16 %v494
        %v794 = vunpack.c.l.b16 %v495
        %v795 = vunpack.c.h.b16 %v495
        %v796 = vunpack.c.l.b16 %v496
        %v797 = vunpack.c.h.b16 %v496
        %v798 = vunpack.c.l.b16 %v497
        %v799 = vunpack.c.h.b16 %v497
        %v800 = vunpack.c.l.b16 %v498
        %v801 = vunpack.c.h.b16 %v498
        %v802 = vunpack.c.l.b16 %v499
        %v803 = vunpack.c.h.b16 %v499
        %v804 = vunpack.c.l.b16 %v500
        %v805 = vunpack.c.h.b16 %v500
        %v806 = vunpack.c.l.b16 %v501
        %v807 = vunpack.c.h.b16 %v501
        %v808 = vunpack.c.l.b16 %v502
        %v809 = vunpack.c.h.b16 %v502
        %v810 = vunpack.c.l.b16 %v503
        %v811 = vunpack.c.h.b16 %v503
        %v812 = vunpack.c.l.b16 %v504
        %v813 = vunpack.c.h.b16 %v504
        %v814 = vunpack.c.l.b16 %v505
        %v815 = vunpack.c.h.b16 %v505
        %v816 = vunpack.c.l.b16 %v506
        %v817 = vunpack.c.h.b16 %v506
        %v818 = vunpack.c.l.b16 %v507
        %v819 = vunpack.c.h.b16 %v507
        %v820 = vunpack.c.l.b16 %v508
        %v821 = vunpack.c.h.b16 %v508
        %v822 = vunpack.c.l.b16 %v509
        %v823 = vunpack.c.h.b16 %v509
        %v824 = vunpack.c.l.b16 %v510
        %v825 = vunpack.c.h.b16 %v510
        %v826 = vunpack.c.l.b16 %v511
        %v827 = vunpack.c.h.b16 %v511
        %v828 = vunpack.c.l.b16 %v512
        %v829 = vunpack.c.h.b16 %v512
        %v830 = vunpack.c.l.b16 %v513
        %v831 = vunpack.c.h.b16 %v513
        %v832 = vunpack.c.l.b16 %v514
        %v833 = vunpack.c.h.b16 %v514
        %v834 = vunpack.c.l.b16 %v515
        %v835 = vunpack.c.h.b16 %v515
        %v836 = vunpack.c.l.b16 %v516
        %v837 = vunpack.c.h.b16 %v516
        %v838 = vunpack.c.l.b16 %v517
        %v839 = vunpack.c.h.b16 %v517
        %v840 = vunpack.c.l.b16 %v518
        %v841 = vunpack.c.h.b16 %v518
        %v842 = vunpack.c.l.b16 %v519
        %v843 = vunpack.c.h.b16 %v519
        %v844 = vunpack.c.l.b16 %v520
        %v845 = vunpack.c.h.b16 %v520
        %v846 = vunpack.c.l.b16 %v521
        %v847 = vunpack.c.h.b16 %v521
        %v848 = vunpack.c.l.b16 %v522
        %v849 = vunpack.c.h.b16 %v522
        %v850 = vunpack.c.l.b16 %v523
        %v851 = vunpack.c.h.b16 %v523
        %v852 = vunpack.c.l.b16 %v524
        %v853 = vunpack.c.h.b16 %v524
        %v854 = vunpack.c.l.b16 %v525
        %v855 = vunpack.c.h.b16 %v525
        %v856 = vunpack.c.l.b16 %v526
        %v857 = vunpack.c.h.b16 %v526
        %v858 = vunpack.c.l.b16 %v527
        %v859 = vunpack.c.h.b16 %v527
        %v860 = vunpack.c.l.b16 %v528
        %v861 = vunpack.c.h.b16 %v528
        %v862 = vunpack.c.l.b16 %v529
        %v863 = vunpack.c.h.b16 %v529
        %v864 = vunpack.c.l.b16 %v530
        %v865 = vunpack.c.h.b16 %v530
        %v866 = vunpack.c.l.b16 %v531
        %v867 = vunpack.c.h.b16 %v531
        %v868 = vunpack.c.l.b16 %v532
        %v869 = vunpack.c.h.b16 %v532
        %v870 = vunpack.c.l.b16 %v533
        %v871 = vunpack.c.h.b16 %v533
        %v872 = vunpack.c.l.b16 %v534
        %v873 = vunpack.c.h.b16 %v534
        %v874 = vunpack.c.l.b16 %v535
        %v875 = vunpack.c.h.b16 %v535
        %v876 = vunpack.c.l.b16 %v536
        %v877 = vunpack.c.h.b16 %v536
        %v878 = vunpack.c.l.b16 %v537
        %v879 = vunpack.c.h.b16 %v537
        %v880 = vunpack.c.l.b16 %v538
        %v881 = vunpack.c.h.b16 %v538
        %v882 = vunpack.c.l.b16 %v539
        %v883 = vunpack.c.h.b16 %v539
        %v884 = vunpack.c.l.b16 %v540
        %v885 = vunpack.c.h.b16 %v540
        %v886 = vunpack.c.l.b16 %v541
        %v887 = vunpack.c.h.b16 %v541
        %v888 = vunpack.c.l.b16 %v542
        %v889 = vunpack.c.h.b16 %v542
        %v890 = vunpack.c.l.b16 %v543
        %v891 = vunpack.c.h.b16 %v543
        %v892 = vunpack.c.l.b16 %v544
        %v893 = vunpack.c.h.b16 %v544
        %v894 = vunpack.c.l.b16 %v545
        %v895 = vunpack.c.h.b16 %v545
        %v896 = vunpack.c.l.b16 %v546
        %v897 = vunpack.c.h.b16 %v546
        %v898 = vunpack.c.l.b16 %v547
        %v899 = vunpack.c.h.b16 %v547
        %v900 = vunpack.c.l.b16 %v548
        %v901 = vunpack.c.h.b16 %v548
        %v902 = vunpack.c.l.b16 %v549
        %v903 = vunpack.c.h.b16 %v549
        %v904 = vunpack.c.l.b16 %v550
        %v905 = vunpack.c.h.b16 %v550
        %v906 = vunpack.c.l.b16 %v551
        %v907 = vunpack.c.h.b16 %v551
        %v908 = vunpack.c.l.b16 %v552
        %v909 = vunpack.c.h.b16 %v552
        %v910 = vunpack.c.l.b16 %v553
        %v911 = vunpack.c.h.b16 %v553
        %v912 = vunpack.c.l.b16 %v554
        %v913 = vunpack.c.h.b16 %v554
        %v914 = vunpack.c.l.b16 %v555
        %v915 = vunpack.c.h.b16 %v555
        %v916 = vunpack.c.l.b16 %v556
        %v917 = vunpack.c.h.b16 %v556
        %v918 = vunpack.c.l.b16 %v557
        %v919 = vunpack.c.h.b16 %v557
        %v920 = vunpack.c.l.b16 %v558
        %v921 = vunpack.c.h.b16 %v558
        %v922 = vunpack.c.l.b16 %v559
        %v923 = vunpack.c.h.b16 %v559
        %v924 = vunpack.c.l.b16 %v560
        %v925 = vunpack.c.h.b16 %v560
        %v926 = vunpack.c.l.b16 %v561
        %v927 = vunpack.c.h.b16 %v561
        %v928 = vunpack.c.l.b16 %v562
        %v929 = vunpack.c.h.b16 %v562
        %v930 = vunpack.c.l.b16 %v563
        %v931 = vunpack.c.h.b16 %v563
        %v932 = vunpack.c.l.b16 %v564
        %v933 = vunpack.c.h.b16 %v564
        %v934 = vunpack.c.l.b16 %v565
        %v935 = vunpack.c.h.b16 %v565
        %v936 = vunpack.c.l.b16 %v566
        %v937 = vunpack.c.h.b16 %v566
        %v938 = vunpack.c.l.b16 %v567
        %v939 = vunpack.c.h.b16 %v567
        %v940 = vunpack.c.l.b16 %v568
        %v941 = vunpack.c.h.b16 %v568
        %v942 = vunpack.c.l.b16 %v569
        %v943 = vunpack.c.h.b16 %v569
        %v944 = vunpack.c.l.b16 %v570
        %v945 = vunpack.c.h.b16 %v570
        %v946 = vunpack.c.l.b16 %v571
        %v947 = vunpack.c.h.b16 %v571
        %v948 = vunpack.c.l.b16 %v572
        %v949 = vunpack.c.h.b16 %v572
        %v950 = vunpack.c.l.b16 %v573
        %v951 = vunpack.c.h.b16 %v573
        %v952 = vunpack.c.l.b16 %v574
        %v953 = vunpack.c.h.b16 %v574
        %v954 = vunpack.c.l.b16 %v575
        %v955 = vunpack.c.h.b16 %v575
        %v956 = vunpack.c.l.b16 %v576
        %v957 = vunpack.c.h.b16 %v576
        %v958 = vunpack.c.l.b16 %v577
        %v959 = vunpack.c.h.b16 %v577
        %v960 = vunpack.c.l.b16 %v578
        %v961 = vunpack.c.h.b16 %v578
        %v962 = vunpack.c.l.b16 %v579
        %v963 = vunpack.c.h.b16 %v579
        %v964 = vunpack.c.l.b16 %v580
        %v965 = vunpack.c.h.b16 %v580
        %v966 = vunpack.c.l.b16 %v581
        %v967 = vunpack.c.h.b16 %v581
        %v968 = vunpack.c.l.b16 %v582
        %v969 = vunpack.c.h.b16 %v582
        %v970 = vunpack.c.l.b16 %v583
        %v971 = vunpack.c.h.b16 %v583
        %v972 = vunpack.c.l.b16 %v584
        %v973 = vunpack.c.h.b16 %v584
        %v974 = vunpack.c.l.b16 %v585
        %v975 = vunpack.c.h.b16 %v585
        %v976 = vunpack.c.l.b16 %v586
        %v977 = vunpack.c.h.b16 %v586
        %v978 = vunpack.c.l.b16 %v587
        %v979 = vunpack.c.h.b16 %v587
        %v980 = vunpack.c.l.b16 %v588
        %v981 = vunpack.c.h.b16 %v588
        %v982 = vunpack.c.l.b16 %v589
        %v983 = vunpack.c.h.b16 %v589
        %v984 = vunpack.c.l.b16 %v590
        %v985 = vunpack.c.h.b16 %v590
        %v986 = vunpack.c.l.b16 %v591
        %v987 = vunpack.c.h.b16 %v591
        %v988 = vunpack.c.l.b16 %v592
        %v989 = vunpack.c.h.b16 %v592
        %v990 = vunpack.c.l.b16 %v593
        %v991 = vunpack.c.h.b16 %v593
        %v992 = vunpack.c.l.b16 %v594
        %v993 = vunpack.c.h.b16 %v594
        %v994 = vunpack.c.l.b16 %v595
        %v995 = vunpack.c.h.b16 %v595
        %v996 = vunpack.c.l.b16 %v596
        %v997 = vunpack.c.h.b16 %v596
        %v998 = vunpack.c.l.b16 %v597
        %v999 = vunpack.c.h.b16 %v597
        %v1000 = vunpack.c.l.b16 %v598
        %v1001 = vunpack.c.h.b16 %v598
        %v1002 = vunpack.c.l.b16 %v599
        %v1003 = vunpack.c.h.b16 %v599
        %v1004 = vunpack.c.l.b16 %v600
        %v1005 = vunpack.c.h.b16 %v600
        %v1006 = vunpack.c.l.b16 %v601
        %v1007 = vunpack.c.h.b16 %v601
        %v1008 = vpack.c.b16 %v756, %v752
        %v1009 = vpack.c.b16 %v757, %v753
        %v1010 = vpack.c.b16 %v758, %v754
        %v1011 = vpack.c.b16 %v759, %v755
        %v1012 = vpack.c.b16 %v764, %v760
        %v1013 = vpack.c.b16 %v765, %v761
        %v1014 = vpack.c.b16 %v766, %v762
        %v1015 = vpack.c.b16 %v767, %v763
        %v1016 = vpack.c.b16 %v772, %v768
        %v1017 = vpack.c.b16 %v773, %v769
        %v1018 = vpack.c.b16 %v774, %v770
        %v1019 = vpack.c.b16 %v775, %v771
        %v1020 = vpack.c.b16 %v780, %v776
        %v1021 = vpack.c.b16 %v781, %v777
        %v1022 = vpack.c.b16 %v782, %v778
        %v1023 = vpack.c.b16 %v783, %v779
        %v1024 = vpack.c.b16 %v788, %v784
        %v1025 = vpack.c.b16 %v789, %v785
        %v1026 = vpack.c.b16 %v790, %v786
        %v1027 = vpack.c.b16 %v791, %v787
        %v1028 = vpack.c.b16 %v796, %v792
        %v1029 = vpack.c.b16 %v797, %v793
        %v1030 = vpack.c.b16 %v798, %v794
        %v1031 = vpack.c.b16 %v799, %v795
        %v1032 = vpack.c.b16 %v804, %v800
        %v1033 = vpack.c.b16 %v805, %v801
        %v1034 = vpack.c.b16 %v806, %v802
        %v1035 = vpack.c.b16 %v807, %v803
        %v1036 = vpack.c.b16 %v812, %v808
        %v1037 = vpack.c.b16 %v813, %v809
        %v1038 = vpack.c.b16 %v814, %v810
        %v1039 = vpack.c.b16 %v815, %v811
        %v1040 = vpack.c.b16 %v820, %v816
        %v1041 = vpack.c.b16 %v821, %v817
        %v1042 = vpack.c.b16 %v822, %v818
        %v1043 = vpack.c.b16 %v823, %v819
        %v1044 = vpack.c.b16 %v828, %v824
        %v1045 = vpack.c.b16 %v829, %v825
        %v1046 = vpack.c.b16 %v830, %v826
        %v1047 = vpack.c.b16 %v831, %v827
        %v1048 = vpack.c.b16 %v836, %v832
        %v1049 = vpack.c.b16 %v837, %v833
        %v1050 = vpack.c.b16 %v838, %v834
        %v1051 = vpack.c.b16 %v839, %v835
        %v1052 = vpack.c.b16 %v844, %v840
        %v1053 = vpack.c.b16 %v845, %v841
        %v1054 = vpack.c.b16 %v846, %v842
        %v1055 = vpack.c.b16 %v847, %v843
        %v1056 = vpack.c.b16 %v852, %v848
        %v1057 = vpack.c.b16 %v853, %v849
        %v1058 = vpack.c.b16 %v854, %v850
        %v1059 = vpack.c.b16 %v855, %v851
        %v1060 = vpack.c.b16 %v860, %v856
        %v1061 = vpack.c.b16 %v861, %v857
        %v1062 = vpack.c.b16 %v862, %v858
        %v1063 = vpack.c.b16 %v863, %v859
        %v1064 = vpack.c.b16 %v868, %v864
        %v1065 = vpack.c.b16 %v869, %v865
        %v1066 = vpack.c.b16 %v870, %v866
        %v1067 = vpack.c.b16 %v871, %v867
        %v1068 = vpack.c.b16 %v876, %v872
        %v1069 = vpack.c.b16 %v877, %v873
        %v1070 = vpack.c.b16 %v878, %v874
        %v1071 = vpack.c.b16 %v879, %v875
        %v1072 = vpack.c.b16 %v884, %v880
        %v1073 = vpack.c.b16 %v885, %v881
        %v1074 = vpack.c.b16 %v886, %v882
        %v1075 = vpack.c.b16 %v887, %v883
        %v1076 = vpack.c.b16 %v892, %v888
        %v1077 = vpack.c.b16 %v893, %v889
        %v1078 = vpack.c.b16 %v894, %v890
        %v1079 = vpack.c.b16 %v895, %v891
        %v1080 = vpack.c.b16 %v900, %v896
        %v1081 = vpack.c.b16 %v901, %v897
        %v1082 = vpack.c.b16 %v902, %v898
        %v1083 = vpack.c.b16 %v903, %v899
        %v1084 = vpack.c.b16 %v908, %v904
        %v1085 = vpack.c.b16 %v909, %v905
        %v1086 = vpack.c.b16 %v910, %v906
        %v1087 = vpack.c.b16 %v911, %v907
        %v1088 = vpack.c.b16 %v916, %v912
        %v1089 = vpack.c.b16 %v917, %v913
        %v1090 = vpack.c.b16 %v918, %v914
        %v1091 = vpack.c.b16 %v919, %v915
        %v1092 = vpack.c.b16 %v924, %v920
        %v1093 = vpack.c.b16 %v925, %v921
        %v1094 = vpack.c.b16 %v926, %v922
        %v1095 = vpack.c.b16 %v927, %v923
        %v1096 = vpack.c.b16 %v932, %v928
        %v1097 = vpack.c.b16 %v933, %v929
        %v1098 = vpack.c.b16 %v934, %v930
        %v1099 = vpack.c.b16 %v935, %v931
        %v1100 = vpack.c.b16 %v940, %v936
        %v1101 = vpack.c.b16 %v941, %v937
        %v1102 = vpack.c.b16 %v942, %v938
        %v1103 = vpack.c.b16 %v943, %v939
        %v1104 = vpack.c.b16 %v948, %v944
        %v1105 = vpack.c.b16 %v949, %v945
        %v1106 = vpack.c.b16 %v950, %v946
        %v1107 = vpack.c.b16 %v951, %v947
        %v1108 = vpack.c.b16 %v956, %v952
        %v1109 = vpack.c.b16 %v957, %v953
        %v1110 = vpack.c.b16 %v958, %v954
        %v1111 = vpack.c.b16 %v959, %v955
        %v1112 = vpack.c.b16 %v964, %v960
        %v1113 = vpack.c.b16 %v965, %v961
        %v1114 = vpack.c.b16 %v966, %v962
        %v1115 = vpack.c.b16 %v967, %v963
        %v1116 = vpack.c.b16 %v972, %v968
        %v1117 = vpack.c.b16 %v973, %v969
        %v1118 = vpack.c.b16 %v974, %v970
        %v1119 = vpack.c.b16 %v975, %v971
        %v1120 = vpack.c.b16 %v980, %v976
        %v1121 = vpack.c.b16 %v981, %v977
        %v1122 = vpack.c.b16 %v982, %v978
        %v1123 = vpack.c.b16 %v983, %v979
        %v1124 = vpack.c.b16 %v988, %v984
        %v1125 = vpack.c.b16 %v989, %v985
        %v1126 = vpack.c.b16 %v990, %v986
        %v1127 = vpack.c.b16 %v991, %v987
        %v1128 = vpack.c.b16 %v996, %v992
        %v1129 = vpack.c.b16 %v997, %v993
        %v1130 = vpack.c.b16 %v998, %v994
        %v1131 = vpack.c.b16 %v999, %v995
        %v1132 = vpack.c.b16 %v1004, %v1000
        %v1133 = vpack.c.b16 %v1005, %v1001
        %v1134 = vpack.c.b16 %v1006, %v1002
        %v1135 = vpack.c.b16 %v1007, %v1003
        %1264 = vmatprep.subr.bf16.mxu0 %v1009
        %1265 = vmatpush1.bf16.msra.mxu0 %v1008
        %1266 = vmatprep.subr.bf16.mxu0 %v1013
        %1267 = vmatpush1.bf16.msra.mxu0 %v1012
        %1268 = vmatprep.subr.bf16.mxu0 %v1017
        %1269 = vmatpush1.bf16.msra.mxu0 %v1016
        %1270 = vmatprep.subr.bf16.mxu0 %v1021
        %1271 = vmatpush1.bf16.msra.mxu0 %v1020
        %1272 = vmatprep.subr.bf16.mxu0 %v1025
        %1273 = vmatpush1.bf16.msra.mxu0 %v1024
        %1274 = vmatprep.subr.bf16.mxu0 %v1029
        %1275 = vmatpush1.bf16.msra.mxu0 %v1028
        %1276 = vmatprep.subr.bf16.mxu0 %v1033
        %1277 = vmatpush1.bf16.msra.mxu0 %v1032
        %1278 = vmatprep.subr.bf16.mxu0 %v1037
        %1279 = vmatpush1.bf16.msra.mxu0 %v1036
        %1280 = vmatprep.subr.bf16.mxu0 %v1041
        %1281 = vmatpush1.bf16.msra.mxu0 %v1040
        %1282 = vmatprep.subr.bf16.mxu0 %v1045
        %1283 = vmatpush1.bf16.msra.mxu0 %v1044
        %1284 = vmatprep.subr.bf16.mxu0 %v1049
        %1285 = vmatpush1.bf16.msra.mxu0 %v1048
        %1286 = vmatprep.subr.bf16.mxu0 %v1053
        %1287 = vmatpush1.bf16.msra.mxu0 %v1052
        %1288 = vmatprep.subr.bf16.mxu0 %v1057
        %1289 = vmatpush1.bf16.msra.mxu0 %v1056
        %1290 = vmatprep.subr.bf16.mxu0 %v1061
        %1291 = vmatpush1.bf16.msra.mxu0 %v1060
        %1292 = vmatprep.subr.bf16.mxu0 %v1065
        %1293 = vmatpush1.bf16.msra.mxu0 %v1064
        %1294 = vmatprep.subr.bf16.mxu0 %v1069
        %1295 = vmatpush1.bf16.msra.mxu0 %v1068
        %1296 = vmatprep.mubr.bf16.mxu0 %v439
        %1297 = vmatmul.mubr.bf16.gmra.mrb[0].mxu0 %v438
        %v1298 = vpop.f32.mrb[0].mxu0
        %v1299 = vadd.f32 %v607, %v1298
        %v1300 = vpop.f32.mrb[0].mxu0
        %v1301 = vadd.f32 %v611, %v1300
        %v1302 = vpop.f32.mrb[0].mxu0
        %v1303 = vadd.f32 %v607, %v1302
        %v1304 = vpop.f32.mrb[0].mxu0
        %v1305 = vadd.f32 %v611, %v1304
        %1306 = vmatprep.mubr.bf16.mxu0 %v443
        %1307 = vmatmul.mubr.bf16.gmra.mrb[0].mxu0 %v442
        %v1308 = vpop.f32.mrb[0].mxu0
        %v1309 = vadd.f32 %v607, %v1308
        %v1310 = vpop.f32.mrb[0].mxu0
        %v1311 = vadd.f32 %v611, %v1310
        %v1312 = vpop.f32.mrb[0].mxu0
        %v1313 = vadd.f32 %v607, %v1312
        %v1314 = vpop.f32.mrb[0].mxu0
        %v1315 = vadd.f32 %v611, %v1314
        %1316 = vmatprep.mubr.bf16.mxu0 %v447
        %1317 = vmatmul.mubr.bf16.gmra.mrb[0].mxu0 %v446
        %v1318 = vpop.f32.mrb[0].mxu0
        %v1319 = vadd.f32 %v607, %v1318
        %v1320 = vpop.f32.mrb[0].mxu0
        %v1321 = vadd.f32 %v611, %v1320
        %v1322 = vpop.f32.mrb[0].mxu0
        %v1323 = vadd.f32 %v607, %v1322
        %v1324 = vpop.f32.mrb[0].mxu0
        %v1325 = vadd.f32 %v611, %v1324
        %1326 = vmatprep.mubr.bf16.mxu0 %v451
        %1327 = vmatmul.mubr.bf16.gmra.mrb[0].mxu0 %v450
        %v1328 = vpop.f32.mrb[0].mxu0
        %v1329 = vadd.f32 %v607, %v1328
        %v1330 = vpop.f32.mrb[0].mxu0
        %v1331 = vadd.f32 %v611, %v1330
        %v1332 = vpop.f32.mrb[0].mxu0
        %v1333 = vadd.f32 %v607, %v1332
        %v1334 = vpop.f32.mrb[0].mxu0
        %v1335 = vadd.f32 %v611, %v1334
        %1336 = vmatprep.mubr.bf16.mxu0 %v455
        %1337 = vmatmul.mubr.bf16.gmra.mrb[0].mxu0 %v454
        %v1338 = vpop.f32.mrb[0].mxu0
        %v1339 = vadd.f32 %v607, %v1338
        %v1340 = vpop.f32.mrb[0].mxu0
        %v1341 = vadd.f32 %v611, %v1340
        %v1342 = vpop.f32.mrb[0].mxu0
        %v1343 = vadd.f32 %v607, %v1342
        %v1344 = vpop.f32.mrb[0].mxu0
        %v1345 = vadd.f32 %v611, %v1344
        %1346 = vmatprep.mubr.bf16.mxu0 %v459
        %1347 = vmatmul.mubr.bf16.gmra.mrb[0].mxu0 %v458
        %v1348 = vpop.f32.mrb[0].mxu0
        %v1349 = vadd.f32 %v607, %v1348
        %v1350 = vpop.f32.mrb[0].mxu0
        %v1351 = vadd.f32 %v611, %v1350
        %v1352 = vpop.f32.mrb[0].mxu0
        %v1353 = vadd.f32 %v607, %v1352
        %v1354 = vpop.f32.mrb[0].mxu0
        %v1355 = vadd.f32 %v611, %v1354
        %1356 = vmatprep.mubr.bf16.mxu0 %v463
        %1357 = vmatmul.mubr.bf16.gmra.mrb[0].mxu0 %v462
        %v1358 = vpop.f32.mrb[0].mxu0
        %v1359 = vadd.f32 %v607, %v1358
        %v1360 = vpop.f32.mrb[0].mxu0
        %v1361 = vadd.f32 %v611, %v1360
        %v1362 = vpop.f32.mrb[0].mxu0
        %v1363 = vadd.f32 %v607, %v1362
        %v1364 = vpop.f32.mrb[0].mxu0
        %v1365 = vadd.f32 %v611, %v1364
        %1366 = vmatprep.mubr.bf16.mxu0 %v467
        %1367 = vmatmul.mubr.bf16.gmra.mrb[0].mxu0 %v466
        %v1368 = vpop.f32.mrb[0].mxu0
        %v1369 = vadd.f32 %v607, %v1368
        %v1370 = vpop.f32.mrb[0].mxu0
        %v1371 = vadd.f32 %v611, %v1370
        %v1372 = vpop.f32.mrb[0].mxu0
        %v1373 = vadd.f32 %v607, %v1372
        %v1374 = vpop.f32.mrb[0].mxu0
        %v1375 = vadd.f32 %v611, %v1374
        %1376 = vdwg.mxu0
        %1377 = vmatprep.subr.bf16.mxu0 %v1073
        %1378 = vmatpush1.bf16.msra.mxu0 %v1072
        %1379 = vmatprep.subr.bf16.mxu0 %v1077
        %1380 = vmatpush1.bf16.msra.mxu0 %v1076
        %1381 = vmatprep.subr.bf16.mxu0 %v1081
        %1382 = vmatpush1.bf16.msra.mxu0 %v1080
        %1383 = vmatprep.subr.bf16.mxu0 %v1085
        %1384 = vmatpush1.bf16.msra.mxu0 %v1084
        %1385 = vmatprep.subr.bf16.mxu0 %v1089
        %1386 = vmatpush1.bf16.msra.mxu0 %v1088
        %1387 = vmatprep.subr.bf16.mxu0 %v1093
        %1388 = vmatpush1.bf16.msra.mxu0 %v1092
        %1389 = vmatprep.subr.bf16.mxu0 %v1097
        %1390 = vmatpush1.bf16.msra.mxu0 %v1096
        %1391 = vmatprep.subr.bf16.mxu0 %v1101
        %1392 = vmatpush1.bf16.msra.mxu0 %v1100
        %1393 = vmatprep.subr.bf16.mxu0 %v1105
        %1394 = vmatpush1.bf16.msra.mxu0 %v1104
        %1395 = vmatprep.subr.bf16.mxu0 %v1109
        %1396 = vmatpush1.bf16.msra.mxu0 %v1108
        %1397 = vmatprep.subr.bf16.mxu0 %v1113
        %1398 = vmatpush1.bf16.msra.mxu0 %v1112
        %1399 = vmatprep.subr.bf16.mxu0 %v1117
        %1400 = vmatpush1.bf16.msra.mxu0 %v1116
        %1401 = vmatprep.subr.bf16.mxu0 %v1121
        %1402 = vmatpush1.bf16.msra.mxu0 %v1120
        %1403 = vmatprep.subr.bf16.mxu0 %v1125
        %1404 = vmatpush1.bf16.msra.mxu0 %v1124
        %1405 = vmatprep.subr.bf16.mxu0 %v1129
        %1406 = vmatpush1.bf16.msra.mxu0 %v1128
        %1407 = vmatprep.subr.bf16.mxu0 %v1133
        %1408 = vmatpush1.bf16.msra.mxu0 %v1132
        %1409 = vmatprep.mubr.bf16.mxu0 %v441
        %1410 = vmatmul.mubr.bf16.gmra.mrb[0].mxu0 %v440
        %v1411 = vpop.f32.mrb[0].mxu0
        %v1412 = vadd.f32 %v1299, %v1411
        %v1413 = vpop.f32.mrb[0].mxu0
        %v1414 = vadd.f32 %v1301, %v1413
        %v1415 = vpop.f32.mrb[0].mxu0
        %v1416 = vadd.f32 %v1303, %v1415
        %v1417 = vpop.f32.mrb[0].mxu0
        %v1418 = vadd.f32 %v1305, %v1417
        %1419 = vmatprep.mubr.bf16.mxu0 %v445
        %1420 = vmatmul.mubr.bf16.gmra.mrb[0].mxu0 %v444
        %v1421 = vpop.f32.mrb[0].mxu0
        %v1422 = vadd.f32 %v1309, %v1421
        %v1423 = vpop.f32.mrb[0].mxu0
        %v1424 = vadd.f32 %v1311, %v1423
        %v1425 = vpop.f32.mrb[0].mxu0
        %v1426 = vadd.f32 %v1313, %v1425
        %v1427 = vpop.f32.mrb[0].mxu0
        %v1428 = vadd.f32 %v1315, %v1427
        %1429 = vmatprep.mubr.bf16.mxu0 %v449
        %1430 = vmatmul.mubr.bf16.gmra.mrb[0].mxu0 %v448
        %v1431 = vpop.f32.mrb[0].mxu0
        %v1432 = vadd.f32 %v1319, %v1431
        %v1433 = vpop.f32.mrb[0].mxu0
        %v1434 = vadd.f32 %v1321, %v1433
        %v1435 = vpop.f32.mrb[0].mxu0
        %v1436 = vadd.f32 %v1323, %v1435
        %v1437 = vpop.f32.mrb[0].mxu0
        %v1438 = vadd.f32 %v1325, %v1437
        %1439 = vmatprep.mubr.bf16.mxu0 %v453
        %1440 = vmatmul.mubr.bf16.gmra.mrb[0].mxu0 %v452
        %v1441 = vpop.f32.mrb[0].mxu0
        %v1442 = vadd.f32 %v1329, %v1441
        %v1443 = vpop.f32.mrb[0].mxu0
        %v1444 = vadd.f32 %v1331, %v1443
        %v1445 = vpop.f32.mrb[0].mxu0
        %v1446 = vadd.f32 %v1333, %v1445
        %v1447 = vpop.f32.mrb[0].mxu0
        %v1448 = vadd.f32 %v1335, %v1447
        %1449 = vmatprep.mubr.bf16.mxu0 %v457
        %1450 = vmatmul.mubr.bf16.gmra.mrb[0].mxu0 %v456
        %v1451 = vpop.f32.mrb[0].mxu0
        %v1452 = vadd.f32 %v1339, %v1451
        %v1453 = vpop.f32.mrb[0].mxu0
        %v1454 = vadd.f32 %v1341, %v1453
        %v1455 = vpop.f32.mrb[0].mxu0
        %v1456 = vadd.f32 %v1343, %v1455
        %v1457 = vpop.f32.mrb[0].mxu0
        %v1458 = vadd.f32 %v1345, %v1457
        %1459 = vmatprep.mubr.bf16.mxu0 %v461
        %1460 = vmatmul.mubr.bf16.gmra.mrb[0].mxu0 %v460
        %v1461 = vpop.f32.mrb[0].mxu0
        %v1462 = vadd.f32 %v1349, %v1461
        %v1463 = vpop.f32.mrb[0].mxu0
        %v1464 = vadd.f32 %v1351, %v1463
        %v1465 = vpop.f32.mrb[0].mxu0
        %v1466 = vadd.f32 %v1353, %v1465
        %v1467 = vpop.f32.mrb[0].mxu0
        %v1468 = vadd.f32 %v1355, %v1467
        %1469 = vmatprep.mubr.bf16.mxu0 %v465
        %1470 = vmatmul.mubr.bf16.gmra.mrb[0].mxu0 %v464
        %v1471 = vpop.f32.mrb[0].mxu0
        %v1472 = vadd.f32 %v1359, %v1471
        %v1473 = vpop.f32.mrb[0].mxu0
        %v1474 = vadd.f32 %v1361, %v1473
        %v1475 = vpop.f32.mrb[0].mxu0
        %v1476 = vadd.f32 %v1363, %v1475
        %v1477 = vpop.f32.mrb[0].mxu0
        %v1478 = vadd.f32 %v1365, %v1477
        %1479 = vmatprep.mubr.bf16.mxu0 %v469
        %1480 = vmatmul.mubr.bf16.gmra.mrb[0].mxu0 %v468
        %v1481 = vpop.f32.mrb[0].mxu0
        %v1482 = vadd.f32 %v1369, %v1481
        %v1483 = vpop.f32.mrb[0].mxu0
        %v1484 = vadd.f32 %v1371, %v1483
        %v1485 = vpop.f32.mrb[0].mxu0
        %v1486 = vadd.f32 %v1373, %v1485
        %v1487 = vpop.f32.mrb[0].mxu0
        %v1488 = vadd.f32 %v1375, %v1487
        %1489 = vdwg.mxu0
        %1490 = vmatprep.subr.bf16.mxu0 %v1011
        %1491 = vmatpush1.bf16.msra.mxu0 %v1010
        %1492 = vmatprep.subr.bf16.mxu0 %v1015
        %1493 = vmatpush1.bf16.msra.mxu0 %v1014
        %1494 = vmatprep.subr.bf16.mxu0 %v1019
        %1495 = vmatpush1.bf16.msra.mxu0 %v1018
        %1496 = vmatprep.subr.bf16.mxu0 %v1023
        %1497 = vmatpush1.bf16.msra.mxu0 %v1022
        %1498 = vmatprep.subr.bf16.mxu0 %v1027
        %1499 = vmatpush1.bf16.msra.mxu0 %v1026
        %1500 = vmatprep.subr.bf16.mxu0 %v1031
        %1501 = vmatpush1.bf16.msra.mxu0 %v1030
        %1502 = vmatprep.subr.bf16.mxu0 %v1035
        %1503 = vmatpush1.bf16.msra.mxu0 %v1034
        %1504 = vmatprep.subr.bf16.mxu0 %v1039
        %1505 = vmatpush1.bf16.msra.mxu0 %v1038
        %1506 = vmatprep.subr.bf16.mxu0 %v1043
        %1507 = vmatpush1.bf16.msra.mxu0 %v1042
        %1508 = vmatprep.subr.bf16.mxu0 %v1047
        %1509 = vmatpush1.bf16.msra.mxu0 %v1046
        %1510 = vmatprep.subr.bf16.mxu0 %v1051
        %1511 = vmatpush1.bf16.msra.mxu0 %v1050
        %1512 = vmatprep.subr.bf16.mxu0 %v1055
        %1513 = vmatpush1.bf16.msra.mxu0 %v1054
        %1514 = vmatprep.subr.bf16.mxu0 %v1059
        %1515 = vmatpush1.bf16.msra.mxu0 %v1058
        %1516 = vmatprep.subr.bf16.mxu0 %v1063
        %1517 = vmatpush1.bf16.msra.mxu0 %v1062
        %1518 = vmatprep.subr.bf16.mxu0 %v1067
        %1519 = vmatpush1.bf16.msra.mxu0 %v1066
        %1520 = vmatprep.subr.bf16.mxu0 %v1071
        %1521 = vmatpush1.bf16.msra.mxu0 %v1070
        %1522 = vmatprep.mubr.bf16.mxu0 %v439
        %1523 = vmatmul.mubr.bf16.gmra.mrb[0].mxu0 %v438
        %v1524 = vpop.f32.mrb[0].mxu0
        %v1525 = vadd.f32 %v615, %v1524
        %v1526 = vpop.f32.mrb[0].mxu0
        %v1527 = vadd.f32 %v619, %v1526
        %v1528 = vpop.f32.mrb[0].mxu0
        %v1529 = vadd.f32 %v615, %v1528
        %v1530 = vpop.f32.mrb[0].mxu0
        %v1531 = vadd.f32 %v619, %v1530
        %1532 = vmatprep.mubr.bf16.mxu0 %v443
        %1533 = vmatmul.mubr.bf16.gmra.mrb[0].mxu0 %v442
        %v1534 = vpop.f32.mrb[0].mxu0
        %v1535 = vadd.f32 %v615, %v1534
        %v1536 = vpop.f32.mrb[0].mxu0
        %v1537 = vadd.f32 %v619, %v1536
        %v1538 = vpop.f32.mrb[0].mxu0
        %v1539 = vadd.f32 %v615, %v1538
        %v1540 = vpop.f32.mrb[0].mxu0
        %v1541 = vadd.f32 %v619, %v1540
        %1542 = vmatprep.mubr.bf16.mxu0 %v447
        %1543 = vmatmul.mubr.bf16.gmra.mrb[0].mxu0 %v446
        %v1544 = vpop.f32.mrb[0].mxu0
        %v1545 = vadd.f32 %v615, %v1544
        %v1546 = vpop.f32.mrb[0].mxu0
        %v1547 = vadd.f32 %v619, %v1546
        %v1548 = vpop.f32.mrb[0].mxu0
        %v1549 = vadd.f32 %v615, %v1548
        %v1550 = vpop.f32.mrb[0].mxu0
        %v1551 = vadd.f32 %v619, %v1550
        %1552 = vmatprep.mubr.bf16.mxu0 %v451
        %1553 = vmatmul.mubr.bf16.gmra.mrb[0].mxu0 %v450
        %v1554 = vpop.f32.mrb[0].mxu0
        %v1555 = vadd.f32 %v615, %v1554
        %v1556 = vpop.f32.mrb[0].mxu0
        %v1557 = vadd.f32 %v619, %v1556
        %v1558 = vpop.f32.mrb[0].mxu0
        %v1559 = vadd.f32 %v615, %v1558
        %v1560 = vpop.f32.mrb[0].mxu0
        %v1561 = vadd.f32 %v619, %v1560
        %1562 = vmatprep.mubr.bf16.mxu0 %v455
        %1563 = vmatmul.mubr.bf16.gmra.mrb[0].mxu0 %v454
        %v1564 = vpop.f32.mrb[0].mxu0
        %v1565 = vadd.f32 %v615, %v1564
        %v1566 = vpop.f32.mrb[0].mxu0
        %v1567 = vadd.f32 %v619, %v1566
        %v1568 = vpop.f32.mrb[0].mxu0
        %v1569 = vadd.f32 %v615, %v1568
        %v1570 = vpop.f32.mrb[0].mxu0
        %v1571 = vadd.f32 %v619, %v1570
        %1572 = vmatprep.mubr.bf16.mxu0 %v459
        %1573 = vmatmul.mubr.bf16.gmra.mrb[0].mxu0 %v458
        %v1574 = vpop.f32.mrb[0].mxu0
        %v1575 = vadd.f32 %v615, %v1574
        %v1576 = vpop.f32.mrb[0].mxu0
        %v1577 = vadd.f32 %v619, %v1576
        %v1578 = vpop.f32.mrb[0].mxu0
        %v1579 = vadd.f32 %v615, %v1578
        %v1580 = vpop.f32.mrb[0].mxu0
        %v1581 = vadd.f32 %v619, %v1580
        %1582 = vmatprep.mubr.bf16.mxu0 %v463
        %1583 = vmatmul.mubr.bf16.gmra.mrb[0].mxu0 %v462
        %v1584 = vpop.f32.mrb[0].mxu0
        %v1585 = vadd.f32 %v615, %v1584
        %v1586 = vpop.f32.mrb[0].mxu0
        %v1587 = vadd.f32 %v619, %v1586
        %v1588 = vpop.f32.mrb[0].mxu0
        %v1589 = vadd.f32 %v615, %v1588
        %v1590 = vpop.f32.mrb[0].mxu0
        %v1591 = vadd.f32 %v619, %v1590
        %1592 = vmatprep.mubr.bf16.mxu0 %v467
        %1593 = vmatmul.mubr.bf16.gmra.mrb[0].mxu0 %v466
        %v1594 = vpop.f32.mrb[0].mxu0
        %v1595 = vadd.f32 %v615, %v1594
        %v1596 = vpop.f32.mrb[0].mxu0
        %v1597 = vadd.f32 %v619, %v1596
        %v1598 = vpop.f32.mrb[0].mxu0
        %v1599 = vadd.f32 %v615, %v1598
        %v1600 = vpop.f32.mrb[0].mxu0
        %v1601 = vadd.f32 %v619, %v1600
        %1602 = vdwg.mxu0
        %1603 = vmatprep.subr.bf16.mxu0 %v1075
        %1604 = vmatpush1.bf16.msra.mxu0 %v1074
        %1605 = vmatprep.subr.bf16.mxu0 %v1079
        %1606 = vmatpush1.bf16.msra.mxu0 %v1078
        %1607 = vmatprep.subr.bf16.mxu0 %v1083
        %1608 = vmatpush1.bf16.msra.mxu0 %v1082
        %1609 = vmatprep.subr.bf16.mxu0 %v1087
        %1610 = vmatpush1.bf16.msra.mxu0 %v1086
        %1611 = vmatprep.subr.bf16.mxu0 %v1091
        %1612 = vmatpush1.bf16.msra.mxu0 %v1090
        %1613 = vmatprep.subr.bf16.mxu0 %v1095
        %1614 = vmatpush1.bf16.msra.mxu0 %v1094
        %1615 = vmatprep.subr.bf16.mxu0 %v1099
        %1616 = vmatpush1.bf16.msra.mxu0 %v1098
        %1617 = vmatprep.subr.bf16.mxu0 %v1103
        %1618 = vmatpush1.bf16.msra.mxu0 %v1102
        %1619 = vmatprep.subr.bf16.mxu0 %v1107
        %1620 = vmatpush1.bf16.msra.mxu0 %v1106
        %1621 = vmatprep.subr.bf16.mxu0 %v1111
        %1622 = vmatpush1.bf16.msra.mxu0 %v1110
        %1623 = vmatprep.subr.bf16.mxu0 %v1115
        %1624 = vmatpush1.bf16.msra.mxu0 %v1114
        %1625 = vmatprep.subr.bf16.mxu0 %v1119
        %1626 = vmatpush1.bf16.msra.mxu0 %v1118
        %1627 = vmatprep.subr.bf16.mxu0 %v1123
        %1628 = vmatpush1.bf16.msra.mxu0 %v1122
        %1629 = vmatprep.subr.bf16.mxu0 %v1127
        %1630 = vmatpush1.bf16.msra.mxu0 %v1126
        %1631 = vmatprep.subr.bf16.mxu0 %v1131
        %1632 = vmatpush1.bf16.msra.mxu0 %v1130
        %1633 = vmatprep.subr.bf16.mxu0 %v1135
        %1634 = vmatpush1.bf16.msra.mxu0 %v1134
        %1635 = vmatprep.mubr.bf16.mxu0 %v441
        %1636 = vmatmul.mubr.bf16.gmra.mrb[0].mxu0 %v440
        %v1637 = vpop.f32.mrb[0].mxu0
        %v1638 = vadd.f32 %v1525, %v1637
        %v1639 = vpop.f32.mrb[0].mxu0
        %v1640 = vadd.f32 %v1527, %v1639
        %v1641 = vpop.f32.mrb[0].mxu0
        %v1642 = vadd.f32 %v1529, %v1641
        %v1643 = vpop.f32.mrb[0].mxu0
        %v1644 = vadd.f32 %v1531, %v1643
        %1645 = vmatprep.mubr.bf16.mxu0 %v445
        %1646 = vmatmul.mubr.bf16.gmra.mrb[0].mxu0 %v444
        %v1647 = vpop.f32.mrb[0].mxu0
        %v1648 = vadd.f32 %v1535, %v1647
        %v1649 = vpop.f32.mrb[0].mxu0
        %v1650 = vadd.f32 %v1537, %v1649
        %v1651 = vpop.f32.mrb[0].mxu0
        %v1652 = vadd.f32 %v1539, %v1651
        %v1653 = vpop.f32.mrb[0].mxu0
        %v1654 = vadd.f32 %v1541, %v1653
        %1655 = vmatprep.mubr.bf16.mxu0 %v449
        %1656 = vmatmul.mubr.bf16.gmra.mrb[0].mxu0 %v448
        %v1657 = vpop.f32.mrb[0].mxu0
        %v1658 = vadd.f32 %v1545, %v1657
        %v1659 = vpop.f32.mrb[0].mxu0
        %v1660 = vadd.f32 %v1547, %v1659
        %v1661 = vpop.f32.mrb[0].mxu0
        %v1662 = vadd.f32 %v1549, %v1661
        %v1663 = vpop.f32.mrb[0].mxu0
        %v1664 = vadd.f32 %v1551, %v1663
        %1665 = vmatprep.mubr.bf16.mxu0 %v453
        %1666 = vmatmul.mubr.bf16.gmra.mrb[0].mxu0 %v452
        %v1667 = vpop.f32.mrb[0].mxu0
        %v1668 = vadd.f32 %v1555, %v1667
        %v1669 = vpop.f32.mrb[0].mxu0
        %v1670 = vadd.f32 %v1557, %v1669
        %v1671 = vpop.f32.mrb[0].mxu0
        %v1672 = vadd.f32 %v1559, %v1671
        %v1673 = vpop.f32.mrb[0].mxu0
        %v1674 = vadd.f32 %v1561, %v1673
        %1675 = vmatprep.mubr.bf16.mxu0 %v457
        %1676 = vmatmul.mubr.bf16.gmra.mrb[0].mxu0 %v456
        %v1677 = vpop.f32.mrb[0].mxu0
        %v1678 = vadd.f32 %v1565, %v1677
        %v1679 = vpop.f32.mrb[0].mxu0
        %v1680 = vadd.f32 %v1567, %v1679
        %v1681 = vpop.f32.mrb[0].mxu0
        %v1682 = vadd.f32 %v1569, %v1681
        %v1683 = vpop.f32.mrb[0].mxu0
        %v1684 = vadd.f32 %v1571, %v1683
        %1685 = vmatprep.mubr.bf16.mxu0 %v461
        %1686 = vmatmul.mubr.bf16.gmra.mrb[0].mxu0 %v460
        %v1687 = vpop.f32.mrb[0].mxu0
        %v1688 = vadd.f32 %v1575, %v1687
        %v1689 = vpop.f32.mrb[0].mxu0
        %v1690 = vadd.f32 %v1577, %v1689
        %v1691 = vpop.f32.mrb[0].mxu0
        %v1692 = vadd.f32 %v1579, %v1691
        %v1693 = vpop.f32.mrb[0].mxu0
        %v1694 = vadd.f32 %v1581, %v1693
        %1695 = vmatprep.mubr.bf16.mxu0 %v465
        %1696 = vmatmul.mubr.bf16.gmra.mrb[0].mxu0 %v464
        %v1697 = vpop.f32.mrb[0].mxu0
        %v1698 = vadd.f32 %v1585, %v1697
        %v1699 = vpop.f32.mrb[0].mxu0
        %v1700 = vadd.f32 %v1587, %v1699
        %v1701 = vpop.f32.mrb[0].mxu0
        %v1702 = vadd.f32 %v1589, %v1701
        %v1703 = vpop.f32.mrb[0].mxu0
        %v1704 = vadd.f32 %v1591, %v1703
        %1705 = vmatprep.mubr.bf16.mxu0 %v469
        %1706 = vmatmul.mubr.bf16.gmra.mrb[0].mxu0 %v468
        %v1707 = vpop.f32.mrb[0].mxu0
        %v1708 = vadd.f32 %v1595, %v1707
        %v1709 = vpop.f32.mrb[0].mxu0
        %v1710 = vadd.f32 %v1597, %v1709
        %v1711 = vpop.f32.mrb[0].mxu0
        %v1712 = vadd.f32 %v1599, %v1711
        %v1713 = vpop.f32.mrb[0].mxu0
        %v1714 = vadd.f32 %v1601, %v1713
        %1715 = vdwg.mxu0
        %s1716 = smul.addr %s470, 8
        %s1717 = scalar_lea.vmem %s202, %s1716 [#allocation3]
        %v1718 = vld [vmem:[%s1717] sm:$0xff]
        %v1719 = vld [vmem:[%s1717 + $0x8] sm:$0xff]
        %v1720 = vld [vmem:[%s1717 + $0x10] sm:$0xff]
        %v1721 = vld [vmem:[%s1717 + $0x18] sm:$0xff]
        %v1722 = vld [vmem:[%s1717 + $0x20] sm:$0xff]
        %v1723 = vld [vmem:[%s1717 + $0x28] sm:$0xff]
        %v1724 = vld [vmem:[%s1717 + $0x30] sm:$0xff]
        %v1725 = vld [vmem:[%s1717 + $0x38] sm:$0xff]
        %v1726 = vld [vmem:[%s1717 + $0x40] sm:$0xff]
        %v1727 = vld [vmem:[%s1717 + $0x48] sm:$0xff]
        %v1728 = vld [vmem:[%s1717 + $0x50] sm:$0xff]
        %v1729 = vld [vmem:[%s1717 + $0x58] sm:$0xff]
        %v1730 = vld [vmem:[%s1717 + $0x60] sm:$0xff]
        %v1731 = vld [vmem:[%s1717 + $0x68] sm:$0xff]
        %v1732 = vld [vmem:[%s1717 + $0x70] sm:$0xff]
        %v1733 = vld [vmem:[%s1717 + $0x78] sm:$0xff]
        %v1734 = vld [vmem:[%s1717 + $0x80] sm:$0xff]
        %v1735 = vld [vmem:[%s1717 + $0x88] sm:$0xff]
        %v1736 = vld [vmem:[%s1717 + $0x90] sm:$0xff]
        %v1737 = vld [vmem:[%s1717 + $0x98] sm:$0xff]
        %v1738 = vld [vmem:[%s1717 + $0xa0] sm:$0xff]
        %v1739 = vld [vmem:[%s1717 + $0xa8] sm:$0xff]
        %v1740 = vld [vmem:[%s1717 + $0xb0] sm:$0xff]
        %v1741 = vld [vmem:[%s1717 + $0xb8] sm:$0xff]
        %v1742 = vld [vmem:[%s1717 + $0xc0] sm:$0xff]
        %v1743 = vld [vmem:[%s1717 + $0xc8] sm:$0xff]
        %v1744 = vld [vmem:[%s1717 + $0xd0] sm:$0xff]
        %v1745 = vld [vmem:[%s1717 + $0xd8] sm:$0xff]
        %v1746 = vld [vmem:[%s1717 + $0xe0] sm:$0xff]
        %v1747 = vld [vmem:[%s1717 + $0xe8] sm:$0xff]
        %v1748 = vld [vmem:[%s1717 + $0xf0] sm:$0xff]
        %v1749 = vld [vmem:[%s1717 + $0xf8] sm:$0xff]
        %v1750 = vld [vmem:[%s1717 + $0x100] sm:$0xff]
        %v1751 = vld [vmem:[%s1717 + $0x108] sm:$0xff]
        %v1752 = vld [vmem:[%s1717 + $0x110] sm:$0xff]
        %v1753 = vld [vmem:[%s1717 + $0x118] sm:$0xff]
        %v1754 = vld [vmem:[%s1717 + $0x120] sm:$0xff]
        %v1755 = vld [vmem:[%s1717 + $0x128] sm:$0xff]
        %v1756 = vld [vmem:[%s1717 + $0x130] sm:$0xff]
        %v1757 = vld [vmem:[%s1717 + $0x138] sm:$0xff]
        %v1758 = vld [vmem:[%s1717 + $0x140] sm:$0xff]
        %v1759 = vld [vmem:[%s1717 + $0x148] sm:$0xff]
        %v1760 = vld [vmem:[%s1717 + $0x150] sm:$0xff]
        %v1761 = vld [vmem:[%s1717 + $0x158] sm:$0xff]
        %v1762 = vld [vmem:[%s1717 + $0x160] sm:$0xff]
        %v1763 = vld [vmem:[%s1717 + $0x168] sm:$0xff]
        %v1764 = vld [vmem:[%s1717 + $0x170] sm:$0xff]
        %v1765 = vld [vmem:[%s1717 + $0x178] sm:$0xff]
        %v1766 = vld [vmem:[%s1717 + $0x180] sm:$0xff]
        %v1767 = vld [vmem:[%s1717 + $0x188] sm:$0xff]
        %v1768 = vld [vmem:[%s1717 + $0x190] sm:$0xff]
        %v1769 = vld [vmem:[%s1717 + $0x198] sm:$0xff]
        %v1770 = vld [vmem:[%s1717 + $0x1a0] sm:$0xff]
        %v1771 = vld [vmem:[%s1717 + $0x1a8] sm:$0xff]
        %v1772 = vld [vmem:[%s1717 + $0x1b0] sm:$0xff]
        %v1773 = vld [vmem:[%s1717 + $0x1b8] sm:$0xff]
        %v1774 = vld [vmem:[%s1717 + $0x1c0] sm:$0xff]
        %v1775 = vld [vmem:[%s1717 + $0x1c8] sm:$0xff]
        %v1776 = vld [vmem:[%s1717 + $0x1d0] sm:$0xff]
        %v1777 = vld [vmem:[%s1717 + $0x1d8] sm:$0xff]
        %v1778 = vld [vmem:[%s1717 + $0x1e0] sm:$0xff]
        %v1779 = vld [vmem:[%s1717 + $0x1e8] sm:$0xff]
        %v1780 = vld [vmem:[%s1717 + $0x1f0] sm:$0xff]
        %v1781 = vld [vmem:[%s1717 + $0x1f8] sm:$0xff]
        %v1782 = vadd.f32 %v1412, %v1718
        %v1783 = vadd.f32 %v1414, %v1719
        %v1784 = vadd.f32 %v1638, %v1720
        %v1785 = vadd.f32 %v1640, %v1721
        %v1786 = vadd.f32 %v1416, %v1722
        %v1787 = vadd.f32 %v1418, %v1723
        %v1788 = vadd.f32 %v1642, %v1724
        %v1789 = vadd.f32 %v1644, %v1725
        %v1790 = vadd.f32 %v1422, %v1726
        %v1791 = vadd.f32 %v1424, %v1727
        %v1792 = vadd.f32 %v1648, %v1728
        %v1793 = vadd.f32 %v1650, %v1729
        %v1794 = vadd.f32 %v1426, %v1730
        %v1795 = vadd.f32 %v1428, %v1731
        %v1796 = vadd.f32 %v1652, %v1732
        %v1797 = vadd.f32 %v1654, %v1733
        %v1798 = vadd.f32 %v1432, %v1734
        %v1799 = vadd.f32 %v1434, %v1735
        %v1800 = vadd.f32 %v1658, %v1736
        %v1801 = vadd.f32 %v1660, %v1737
        %v1802 = vadd.f32 %v1436, %v1738
        %v1803 = vadd.f32 %v1438, %v1739
        %v1804 = vadd.f32 %v1662, %v1740
        %v1805 = vadd.f32 %v1664, %v1741
        %v1806 = vadd.f32 %v1442, %v1742
        %v1807 = vadd.f32 %v1444, %v1743
        %v1808 = vadd.f32 %v1668, %v1744
        %v1809 = vadd.f32 %v1670, %v1745
        %v1810 = vadd.f32 %v1446, %v1746
        %v1811 = vadd.f32 %v1448, %v1747
        %v1812 = vadd.f32 %v1672, %v1748
        %v1813 = vadd.f32 %v1674, %v1749
        %v1814 = vadd.f32 %v1452, %v1750
        %v1815 = vadd.f32 %v1454, %v1751
        %v1816 = vadd.f32 %v1678, %v1752
        %v1817 = vadd.f32 %v1680, %v1753
        %v1818 = vadd.f32 %v1456, %v1754
        %v1819 = vadd.f32 %v1458, %v1755
        %v1820 = vadd.f32 %v1682, %v1756
        %v1821 = vadd.f32 %v1684, %v1757
        %v1822 = vadd.f32 %v1462, %v1758
        %v1823 = vadd.f32 %v1464, %v1759
        %v1824 = vadd.f32 %v1688, %v1760
        %v1825 = vadd.f32 %v1690, %v1761
        %v1826 = vadd.f32 %v1466, %v1762
        %v1827 = vadd.f32 %v1468, %v1763
        %v1828 = vadd.f32 %v1692, %v1764
        %v1829 = vadd.f32 %v1694, %v1765
        %v1830 = vadd.f32 %v1472, %v1766
        %v1831 = vadd.f32 %v1474, %v1767
        %v1832 = vadd.f32 %v1698, %v1768
        %v1833 = vadd.f32 %v1700, %v1769
        %v1834 = vadd.f32 %v1476, %v1770
        %v1835 = vadd.f32 %v1478, %v1771
        %v1836 = vadd.f32 %v1702, %v1772
        %v1837 = vadd.f32 %v1704, %v1773
        %v1838 = vadd.f32 %v1482, %v1774
        %v1839 = vadd.f32 %v1484, %v1775
        %v1840 = vadd.f32 %v1708, %v1776
        %v1841 = vadd.f32 %v1710, %v1777
        %v1842 = vadd.f32 %v1486, %v1778
        %v1843 = vadd.f32 %v1488, %v1779
        %v1844 = vadd.f32 %v1712, %v1780
        %v1845 = vadd.f32 %v1714, %v1781
        %1846 = vst [vmem:[%s232] sm:$0xff] %v1782
        %1847 = vst [vmem:[%s232 + $0x8] sm:$0xff] %v1783
        %1848 = vst [vmem:[%s232 + $0x10] sm:$0xff] %v1784
        %1849 = vst [vmem:[%s232 + $0x18] sm:$0xff] %v1785
        %1850 = vst [vmem:[%s232 + $0x20] sm:$0xff] %v1786
        %1851 = vst [vmem:[%s232 + $0x28] sm:$0xff] %v1787
        %1852 = vst [vmem:[%s232 + $0x30] sm:$0xff] %v1788
        %1853 = vst [vmem:[%s232 + $0x38] sm:$0xff] %v1789
        %1854 = vst [vmem:[%s232 + $0x40] sm:$0xff] %v1790
        %1855 = vst [vmem:[%s232 + $0x48] sm:$0xff] %v1791
        %1856 = vst [vmem:[%s232 + $0x50] sm:$0xff] %v1792
        %1857 = vst [vmem:[%s232 + $0x58] sm:$0xff] %v1793
        %1858 = vst [vmem:[%s232 + $0x60] sm:$0xff] %v1794
        %1859 = vst [vmem:[%s232 + $0x68] sm:$0xff] %v1795
        %1860 = vst [vmem:[%s232 + $0x70] sm:$0xff] %v1796
        %1861 = vst [vmem:[%s232 + $0x78] sm:$0xff] %v1797
        %1862 = vst [vmem:[%s232 + $0x80] sm:$0xff] %v1798
        %1863 = vst [vmem:[%s232 + $0x88] sm:$0xff] %v1799
        %1864 = vst [vmem:[%s232 + $0x90] sm:$0xff] %v1800
        %1865 = vst [vmem:[%s232 + $0x98] sm:$0xff] %v1801
        %1866 = vst [vmem:[%s232 + $0xa0] sm:$0xff] %v1802
        %1867 = vst [vmem:[%s232 + $0xa8] sm:$0xff] %v1803
        %1868 = vst [vmem:[%s232 + $0xb0] sm:$0xff] %v1804
        %1869 = vst [vmem:[%s232 + $0xb8] sm:$0xff] %v1805
        %1870 = vst [vmem:[%s232 + $0xc0] sm:$0xff] %v1806
        %1871 = vst [vmem:[%s232 + $0xc8] sm:$0xff] %v1807
        %1872 = vst [vmem:[%s232 + $0xd0] sm:$0xff] %v1808
        %1873 = vst [vmem:[%s232 + $0xd8] sm:$0xff] %v1809
        %1874 = vst [vmem:[%s232 + $0xe0] sm:$0xff] %v1810
        %1875 = vst [vmem:[%s232 + $0xe8] sm:$0xff] %v1811
        %1876 = vst [vmem:[%s232 + $0xf0] sm:$0xff] %v1812
        %1877 = vst [vmem:[%s232 + $0xf8] sm:$0xff] %v1813
        %1878 = vst [vmem:[%s232 + $0x100] sm:$0xff] %v1814
        %1879 = vst [vmem:[%s232 + $0x108] sm:$0xff] %v1815
        %1880 = vst [vmem:[%s232 + $0x110] sm:$0xff] %v1816
        %1881 = vst [vmem:[%s232 + $0x118] sm:$0xff] %v1817
        %1882 = vst [vmem:[%s232 + $0x120] sm:$0xff] %v1818
        %1883 = vst [vmem:[%s232 + $0x128] sm:$0xff] %v1819
        %1884 = vst [vmem:[%s232 + $0x130] sm:$0xff] %v1820
        %1885 = vst [vmem:[%s232 + $0x138] sm:$0xff] %v1821
        %1886 = vst [vmem:[%s232 + $0x140] sm:$0xff] %v1822
        %1887 = vst [vmem:[%s232 + $0x148] sm:$0xff] %v1823
        %1888 = vst [vmem:[%s232 + $0x150] sm:$0xff] %v1824
        %1889 = vst [vmem:[%s232 + $0x158] sm:$0xff] %v1825
        %1890 = vst [vmem:[%s232 + $0x160] sm:$0xff] %v1826
        %1891 = vst [vmem:[%s232 + $0x168] sm:$0xff] %v1827
        %1892 = vst [vmem:[%s232 + $0x170] sm:$0xff] %v1828
        %1893 = vst [vmem:[%s232 + $0x178] sm:$0xff] %v1829
        %1894 = vst [vmem:[%s232 + $0x180] sm:$0xff] %v1830
        %1895 = vst [vmem:[%s232 + $0x188] sm:$0xff] %v1831
        %1896 = vst [vmem:[%s232 + $0x190] sm:$0xff] %v1832
        %1897 = vst [vmem:[%s232 + $0x198] sm:$0xff] %v1833
        %1898 = vst [vmem:[%s232 + $0x1a0] sm:$0xff] %v1834
        %1899 = vst [vmem:[%s232 + $0x1a8] sm:$0xff] %v1835
        %1900 = vst [vmem:[%s232 + $0x1b0] sm:$0xff] %v1836
        %1901 = vst [vmem:[%s232 + $0x1b8] sm:$0xff] %v1837
        %1902 = vst [vmem:[%s232 + $0x1c0] sm:$0xff] %v1838
        %1903 = vst [vmem:[%s232 + $0x1c8] sm:$0xff] %v1839
        %1904 = vst [vmem:[%s232 + $0x1d0] sm:$0xff] %v1840
        %1905 = vst [vmem:[%s232 + $0x1d8] sm:$0xff] %v1841
        %1906 = vst [vmem:[%s232 + $0x1e0] sm:$0xff] %v1842
        %1907 = vst [vmem:[%s232 + $0x1e8] sm:$0xff] %v1843
        %1908 = vst [vmem:[%s232 + $0x1f0] sm:$0xff] %v1844
        %1909 = vst [vmem:[%s232 + $0x1f8] sm:$0xff] %v1845
        %s1910 = sand.u32 %s116, 1
        %s1911 = scalar_lea.sflag [#allocation5], %s1910
        %s1912 = sand.u32 %s116, 1
        %s1913 = smul.addr %s1912, 512
        %s1914 = scalar_lea.vmem [#allocation8], %s1913
        // Predicated region
        $region45: #{res_layer.1} parent=31 // pred_check
          %p1915 = pneg %p126
        $region46: #{res_layer.1} parent=31 // pred_check_branch
          %1917 = sbr.rel (%p1915) target = $region48
        $region47: #{res_layer.1} parent=31 // pred_region
          %s1918 = smul.u32 16, %s25
          %s1919 = smul.u32 4, %s26
          %s1921 = ssub.s32 8192, 8192
          %1922 = vsyncadd %s1911, %s1921
          %s1923 = smul.addr %s1918, 4
          %s1924 = sadd.s32 %s1919, %s1923
          %s1925 = smul.addr %s1924, 128
          %s1926 = scalar_lea.hbm %s3, %s1925
          %s1927 = sshll.u32 %s1914, 4
          %s1928 = int_to_ptr.vmem [resolvable:$true] %s1927
          %1933 = dma.vmem_to_hbm [thread:$0]  %s1928, 8192, %s1926, %s1911, 512, 512, 32
        $region48: #{res_layer.1} parent=31 // pred_fallthru
          _
      $region32: #{res_layer.1} parent=5 // pred_fallthru
        _
      %p1934 = scmp.le.s32.totalorder 2, %s16
      // Predicated region
      $region49: #{res_layer.1} parent=5 // pred_check
        %p1935 = pneg %p1934
      $region50: #{res_layer.1} parent=5 // pred_check_branch
        %1937 = sbr.rel (%p1935) target = $region52
      $region51: #{res_layer.1} parent=5 // pred_region
        %s1938 = ssub.s32 %s16, 2
        // Predicated region
        $region53: #{res_layer.1} parent=51 // pred_check
          %p1939 = pneg %p132
        $region54: #{res_layer.1} parent=51 // pred_check_branch
          %1941 = sbr.rel (%p1939) target = $region56
        $region55: #{res_layer.1} parent=51 // pred_region
          %s1942 = sand.u32 %s117, 1
          %s1943 = scalar_lea.sflag [#allocation5], %s1942
          %s1944 = sand.u32 %s117, 1
          %s1945 = smul.addr %s1944, 512
          %s1946 = scalar_lea.vmem [#allocation8], %s1945
          %1947 = dma.done %s1943, 8192
        $region56: #{res_layer.1} parent=51 // pred_fallthru
          _
      $region52: #{res_layer.1} parent=5 // pred_fallthru
        _
    $region6: #{res_layer.1} parent=1 // loop_footer
      %s20 = sadd.s32 1, %s16
    $region7: #{res_layer.1} parent=1 // loop_footer_branch
      %15 = sbr.rel target = $region3
    $region8: #{res_layer.1} parent=1 // loop_exit
      _
    %1948 = vsyncpa [#allocation4], 1
    %s1949 = scalar_lea.sflag [#allocation4], 1
    %1950 = vsyncpa %s1949, 1
    %1951 = vsyncpa [#allocation7], 1
    %1952 = vsyncpa [#allocation5], 1
    %s1953 = scalar_lea.sflag [#allocation5], 1
    %1954 = vsyncpa %s1953, 1

</llo_original>
